<compile_context>
chip_gen: v7x
topology: tpu7x:2x2x1
jax: 0.10.0
libtpu: 0.0.40
codegen_flags: <defaults>
</compile_context>

<pallas_src>
import functools

import jax
import jax.numpy as jnp
import numpy as np
from jax.experimental import pallas as pl
from jax.experimental.pallas import tpu as pltpu


# ----------------------------- in-kernel math helpers -----------------------------

def _ln(x, eps=1e-5):
    """LayerNorm without affine params (torch.nn.LayerNorm(elementwise_affine=False))."""
    mu = jnp.mean(x, axis=-1, keepdims=True)
    var = jnp.mean(jnp.square(x - mu), axis=-1, keepdims=True)
    return (x - mu) * jax.lax.rsqrt(var + eps)


def _erf(x, approx):
    # Abramowitz & Stegun 7.1.26 rational approximation (max abs err ~1.5e-7); uses only ops
    # that lower cleanly in Mosaic (exp/mul/add/where + optional EUP reciprocal).
    a1, a2, a3, a4, a5 = 0.254829592, -0.284496736, 1.421413741, -1.453152027, 1.061405429
    p = 0.3275911
    z = jnp.abs(x)
    den = 1.0 + p * z
    # Move the divide off the VALU onto the (otherwise idle) EUP slot in the fast path.
    t = pl.reciprocal(den, approx=True) if approx else 1.0 / den
    poly = ((((a5 * t + a4) * t + a3) * t + a2) * t + a1) * t
    y = 1.0 - poly * jnp.exp(-z * z)
    return jnp.where(x >= 0.0, y, -y)


def _gelu(x, approx):
    # torch.nn.GELU() default (approximate='none'): 0.5*x*(1+erf(x/sqrt(2)))
    return 0.5 * x * (1.0 + _erf(x * 0.7071067811865476, approx))


# ----------------------------------- kernel ---------------------------------------

def _parallel_attn_feed_kernel(
    x_ref,      # (1, N, D)   compute dtype (bf16 in fast mode)
    wqkv_ref,   # (1, D, 3d)  per-head fused Q|K|V projection
    wo_ref,     # (1, d, D)   per-head slice of the output projection
    bo_ref,     # (1, D)      f32
    w1_ref,     # (D, tM)     MLP first-layer tile
    b1_ref,     # (1, tM)     f32
    w2_ref,     # (tM, D)     MLP second-layer tile
    b2_ref,     # (1, D)      f32
    o_ref,      # (1, N, D)
    acc_ref,    # VMEM scratch (N, D) f32 — shared attention + MLP accumulator
    *,
    scale,
    heads,
    head_dim,
    n_mlp_tiles,
    approx,
):
    j = pl.program_id(1)
    mm_dtype = x_ref.dtype  # matmul operand dtype (x is pre-cast in the wrapper)

    @pl.when(j == 0)
    def _():
        acc_ref[...] = jnp.zeros_like(acc_ref)

    x = x_ref[0]                                                             # (N, D), resident across j

    # -------------------- attention: one head per grid step --------------------
    @pl.when(j < heads)
    def _():
        d = head_dim
        # single fused QKV matmul per head (3x fewer MXU phases, 3d-wide lanes)
        qkv = jnp.dot(x, wqkv_ref[0], preferred_element_type=jnp.float32)    # (N, 3d) f32
        q = _ln(qkv[:, 0 * d:1 * d])
        k = _ln(qkv[:, 1 * d:2 * d])
        v = qkv[:, 2 * d:3 * d]

        # q @ k^T without materializing a transposed copy: contract on d directly.
        dots = jax.lax.dot_general(
            q.astype(mm_dtype), k.astype(mm_dtype),
            dimension_numbers=(((1,), (1,)), ((), ())),
            preferred_element_type=jnp.float32) * scale                      # (N, N)
        dots = dots - jnp.max(dots, axis=-1, keepdims=True)
        e = jnp.exp(dots)
        den = jnp.sum(e, axis=-1, keepdims=True)
        if approx:
            attn = e * pl.reciprocal(den, approx=True)                       # EUP, not VALU
        else:
            attn = e / den

        attn_v = jnp.dot(attn.astype(mm_dtype), v.astype(mm_dtype),
                         preferred_element_type=jnp.float32)                 # (N, d)
        acc_ref[...] += jnp.dot(attn_v.astype(mm_dtype), wo_ref[0],
                                preferred_element_type=jnp.float32)          # (N, D)

    # ---------- parallel MLP: one mlp_dim tile per grid step (interleaved) ----------
    @pl.when(j < n_mlp_tiles)
    def _():
        h = jnp.dot(x, w1_ref[...], preferred_element_type=jnp.float32) + b1_ref[...]
        g = _gelu(h, approx).astype(mm_dtype)
        acc_ref[...] += jnp.dot(g, w2_ref[...], preferred_element_type=jnp.float32)

    # ------------------- epilogue: biases + final LayerNorm --------------------
    @pl.when(j == pl.num_programs(1) - 1)
    def _():
        out = acc_ref[...] + bo_ref[...] + b2_ref[...]
        o_ref[0] = _ln(out).astype(o_ref.dtype)                              # lane-dense (N, D) store


# ----------------------------------- wrapper --------------------------------------

def _mlp_tile(mlp_dim, heads):
    """Pick a 128-lane-multiple mlp_dim tile, targeting ~`heads` tiles so the MLP work
    interleaves with the head sweep and the full (D,M)+(M,D) weights never sit in VMEM."""
    if mlp_dim % 128 != 0:
        return mlp_dim                              # small/unaligned: single full-width tile
    tile = max(128, (mlp_dim // max(heads, 1)) // 128 * 128)
    tile = min(tile, 512)                           # keep per-step VMEM modest (v7x: 64 MiB)
    while mlp_dim % tile != 0:
        tile += 128
    return tile


def parallel_attention_feed(x, params, heads, compute_dtype=jnp.bfloat16):
    b, n, dim = x.shape
    assert dim % heads == 0
    d = dim // heads
    mlp_dim = params["w1_t"].shape[1]
    scale = dim ** (-0.5)   # NOTE: reference module scales by dim**-0.5, not head_dim**-0.5

    tM = _mlp_tile(mlp_dim, heads)
    n_mlp_tiles = mlp_dim // tM
    num_j = max(heads, n_mlp_tiles)

    # ---- weight prep (plain JAX glue) ----
    # to_qkv weight is stored transposed as (D, 3D) with columns ordered (qkv, h, d) like the
    # reference rearrange; fuse per head into one (D, 3d) block so the kernel does a single
    # QKV matmul per head.  All matmul operands are cast to `compute_dtype` here (bf16 halves
    # weight + activation DMA bytes); accumulation stays f32 via preferred_element_type.
    wqkv = (params["wqkv_t"].reshape(dim, 3, heads, d)
            .transpose(2, 0, 1, 3).reshape(heads, dim, 3 * d).astype(compute_dtype))   # (H, D, 3d)
    wo = params["wout_t"].reshape(heads, d, dim).astype(compute_dtype)                  # (H, d, D)
    w1 = params["w1_t"].astype(compute_dtype)                                           # (D, M)
    w2 = params["w2_t"].astype(compute_dtype)                                           # (M, D)
    bo = params["bout"].reshape(1, dim).astype(jnp.float32)
    b1 = params["b1"].reshape(1, mlp_dim).astype(jnp.float32)
    b2 = params["b2"].reshape(1, dim).astype(jnp.float32)
    x_c = x.astype(compute_dtype)   # hoisted out of the kernel: cast once, smaller DMA

    approx = bool(np.dtype(compute_dtype) == np.dtype(jnp.bfloat16))
    kernel = functools.partial(
        _parallel_attn_feed_kernel, scale=scale, heads=heads, head_dim=d,
        n_mlp_tiles=n_mlp_tiles, approx=approx)

    hclamp = heads - 1
    mclamp = n_mlp_tiles - 1

    # Advisory cost estimate so XLA schedules the wrapper-side reshapes around the call.
    flops = int(2 * b * n * dim * 3 * dim            # fused QKV projection
                + 2 * b * heads * n * n * d * 2      # q@k^T and attn@v
                + 2 * b * n * dim * dim              # output projection
                + 2 * b * n * dim * mlp_dim * 2)     # MLP (two matmuls)
    transcendentals = int(b * heads * n * n + b * n * mlp_dim)
    wbytes = sum(int(a.size) * a.dtype.itemsize for a in (wqkv, wo, w1, w2, bo, b1, b2))
    bytes_accessed = int(x_c.size) * x_c.dtype.itemsize + b * n * dim * x.dtype.itemsize + b * wbytes

    return pl.pallas_call(
        kernel,
        out_shape=jax.ShapeDtypeStruct((b, n, dim), x.dtype),
        grid_spec=pltpu.PrefetchScalarGridSpec(
            num_scalar_prefetch=0,
            grid=(b, num_j),
            in_specs=[
                pl.BlockSpec((1, n, dim), lambda i, j: (i, 0, 0)),                            # x
                pl.BlockSpec((1, dim, 3 * d), lambda i, j: (jnp.minimum(j, hclamp), 0, 0)),   # wqkv (per head)
                pl.BlockSpec((1, d, dim), lambda i, j: (jnp.minimum(j, hclamp), 0, 0)),       # wo (per head)
                pl.BlockSpec((1, dim), lambda i, j: (0, 0)),                                  # bo
                pl.BlockSpec((dim, tM), lambda i, j: (0, jnp.minimum(j, mclamp))),            # w1 tile
                pl.BlockSpec((1, tM), lambda i, j: (0, jnp.minimum(j, mclamp))),              # b1 tile
                pl.BlockSpec((tM, dim), lambda i, j: (jnp.minimum(j, mclamp), 0)),            # w2 tile
                pl.BlockSpec((1, dim), lambda i, j: (0, 0)),                                  # b2
            ],
            out_specs=pl.BlockSpec((1, n, dim), lambda i, j: (i, 0, 0)),
            scratch_shapes=[pltpu.VMEM((n, dim), jnp.float32)],
        ),
        compiler_params=pltpu.CompilerParams(
            # batch axis shards across TensorCores; j is an accumulation axis.
            # (Per-step VMEM is ~2 MiB at these tiles, so the default scoped VMEM limit is fine;
            #  on v5e/v6e with long sequences, raise vmem_limit_bytes and enlarge the N block.)
            dimension_semantics=("parallel", "arbitrary"),
        ),
        cost_estimate=pl.CostEstimate(
            flops=flops, transcendentals=transcendentals, bytes_accessed=bytes_accessed),
    )(x_c, wqkv, wo, bo, w1, b1, w2, b2)


# ----------------------------- deterministic parameters ----------------------------

def init_params(key, dim, heads, mlp_dim):
    ks = jax.random.split(key, 7)
    s = 0.05
    return {
        # stored as the TRANSPOSE of torch's Linear.weight (so y = x @ W_t + b)
        "wqkv_t": jax.random.normal(ks[0], (dim, 3 * dim), jnp.float32) * s,  # to_qkv (no bias)
        "wout_t": jax.random.normal(ks[1], (dim, dim), jnp.float32) * s,      # to_out
        "bout":   jax.random.normal(ks[2], (dim,), jnp.float32) * s,
        "w1_t":   jax.random.normal(ks[3], (dim, mlp_dim), jnp.float32) * s,  # parallel[0]
        "b1":     jax.random.normal(ks[4], (mlp_dim,), jnp.float32) * s,
        "w2_t":   jax.random.normal(ks[5], (mlp_dim, dim), jnp.float32) * s,  # parallel[2]
        "b2":     jax.random.normal(ks[6], (dim,), jnp.float32) * s,
    }


# --------------------------------- pure-JAX reference ------------------------------

def reference(x, params, heads):
    b, n, dim = x.shape
    d = dim // heads
    scale = dim ** (-0.5)
    qkv = x @ params["wqkv_t"]                                                  # (B, N, 3D)
    q, k, v = [
        qkv[..., i * dim:(i + 1) * dim].reshape(b, n, heads, d).transpose(0, 2, 1, 3)
        for i in range(3)
    ]                                                                           # (B, H, N, d)
    q, k = _ln(q), _ln(k)
    dots = jnp.einsum("bhid,bhjd->bhij", q, k) * scale
    attn = jax.nn.softmax(dots, axis=-1)
    av = jnp.einsum("bhij,bhjd->bhid", attn, v).transpose(0, 2, 1, 3).reshape(b, n, dim)
    attn_out = av @ params["wout_t"] + params["bout"]
    h1 = x @ params["w1_t"] + params["b1"]
    par = jax.nn.gelu(h1, approximate=False) @ params["w2_t"] + params["b2"]
    return _ln(attn_out + par)


# --------------------------------------- main --------------------------------------

if __name__ == "__main__":
    # Lane/sublane-friendly small shapes: head_dim = 128 (aligned QKV slices), D/M multiples of 128.
    B, N, DIM, HEADS, MLP_DIM = 2, 16, 256, 2, 1024
    # TODO(synk): optional `mask` argument (boolean attention mask) not implemented; mask=None path only.
    # TODO(synk): long sequences need a flash-style K/V-tiled online softmax with a query-tile grid axis
    #             (also giving v7x's second TensorCore a parallel axis at batch=1); out of scope here.

    key = jax.random.PRNGKey(0)
    kx, kp = jax.random.split(key)
    x = jax.random.normal(kx, (B, N, DIM), jnp.float32)
    params = init_params(kp, DIM, HEADS, MLP_DIM)

    ref = jax.block_until_ready(reference(x, params, HEADS))

    # 1) Exact-f32 path: validates the restructured kernel (fused QKV, interleaved MLP tiles,
    #    dot_general attention) against the reference math.
    out_f32 = jax.block_until_ready(
        parallel_attention_feed(x, params, HEADS, compute_dtype=jnp.float32))
    np.testing.assert_allclose(np.asarray(out_f32), np.asarray(ref), rtol=1e-3, atol=1e-3)

    # 2) Optimized bf16-operand path (MXU-native operands, f32 accumulation, EUP reciprocals).
    #    Looser tolerance reflects expected bf16 rounding, not a semantic change.
    out_bf16 = jax.block_until_ready(
        parallel_attention_feed(x, params, HEADS, compute_dtype=jnp.bfloat16))
    np.testing.assert_allclose(np.asarray(out_bf16), np.asarray(ref), rtol=3e-2, atol=3e-2)

    print("KERNEL_OK")
</pallas_src>

<mosaic_0001>
module attributes {stable_mosaic.version = 11 : i64} {
  func.func @_parallel_attn_feed_kernel(%arg0: i32, %arg1: i32, %arg2: memref<1x16x256xf32, #tpu.memory_space<vmem>>, %arg3: memref<1x256x384xf32, #tpu.memory_space<vmem>>, %arg4: memref<1x128x256xf32, #tpu.memory_space<vmem>>, %arg5: memref<1x256xf32, #tpu.memory_space<vmem>>, %arg6: memref<256x512xf32, #tpu.memory_space<vmem>>, %arg7: memref<1x512xf32, #tpu.memory_space<vmem>>, %arg8: memref<512x256xf32, #tpu.memory_space<vmem>>, %arg9: memref<1x256xf32, #tpu.memory_space<vmem>>, %arg10: memref<1x16x256xf32, #tpu.memory_space<vmem>>, %arg11: memref<16x256xf32, #tpu.memory_space<vmem>>) attributes {dimension_semantics = [#tpu.dimension_semantics<parallel>, #tpu.dimension_semantics<arbitrary>], iteration_bounds = array<i64: 2, 2>, scalar_prefetch = 0 : i64, scratch_operands = 1 : i64, tpu.core_type = #tpu.core_type<tc>, window_params = [{transform_indices = @transform_0, window_bounds = array<i64: 1, 16, 256>}, {transform_indices = @transform_1, window_bounds = array<i64: 1, 256, 384>}, {transform_indices = @transform_2, window_bounds = array<i64: 1, 128, 256>}, {pipeline_mode = #tpu.pipeline_mode<synchronous>, transform_indices = @transform_3, window_bounds = array<i64: 1, 256>}, {transform_indices = @transform_4, window_bounds = array<i64: 256, 512>}, {transform_indices = @transform_5, window_bounds = array<i64: 1, 512>}, {transform_indices = @transform_6, window_bounds = array<i64: 512, 256>}, {pipeline_mode = #tpu.pipeline_mode<synchronous>, transform_indices = @transform_7, window_bounds = array<i64: 1, 256>}, {transform_indices = @transform_8, window_bounds = array<i64: 1, 16, 256>}]} {
    %c0_i32 = arith.constant 0 : i32
    %0 = arith.cmpi eq, %arg1, %c0_i32 : i32
    %1 = arith.extui %0 : i1 to i32
    %c0_i32_0 = arith.constant 0 : i32
    %2 = arith.cmpi ne, %1, %c0_i32_0 : i32
    scf.if %2 {
      %cst = arith.constant 0.000000e+00 : f32
      %14 = vector.broadcast %cst : f32 to vector<16x256xf32>
      %c0_7 = arith.constant 0 : index
      %c0_8 = arith.constant 0 : index
      %15 = vector.load %arg11[%c0_7, %c0_8] : memref<16x256xf32, #tpu.memory_space<vmem>>, vector<16x256xf32>
      tpu.vector_store %arg11[%c0_7, %c0_8], %14 {strides = array<i32>} : memref<16x256xf32, #tpu.memory_space<vmem>>, vector<16x256xf32>,
    } else {
    }
    %c0 = arith.constant 0 : index
    %c0_1 = arith.constant 0 : index
    %c0_2 = arith.constant 0 : index
    %3 = vector.load %arg2[%c0, %c0_1, %c0_2] : memref<1x16x256xf32, #tpu.memory_space<vmem>>, vector<1x16x256xf32>
    %4 = vector.shape_cast %3 : vector<1x16x256xf32> to vector<16x256xf32>
    %c2_i32 = arith.constant 2 : i32
    %5 = arith.cmpi slt, %arg1, %c2_i32 : i32
    %6 = arith.extui %5 : i1 to i32
    %c0_i32_3 = arith.constant 0 : i32
    %7 = arith.cmpi ne, %6, %c0_i32_3 : i32
    scf.if %7 {
      %c0_7 = arith.constant 0 : index
      %c0_8 = arith.constant 0 : index
      %c0_9 = arith.constant 0 : index
      %14 = vector.load %arg3[%c0_7, %c0_8, %c0_9] : memref<1x256x384xf32, #tpu.memory_space<vmem>>, vector<1x256x384xf32>
      %15 = vector.shape_cast %14 : vector<1x256x384xf32> to vector<256x384xf32>
      %cst = arith.constant dense<0.000000e+00> : vector<16x384xf32>
      %16 = tpu.matmul %4, %15, %cst {dimension_numbers = #tpu.dot_dimension_numbers<[1], [0], [0], [1], [0, 0, 1, 1], [], []>} : vector<16x256xf32>, vector<256x384xf32>, vector<16x384xf32> -> vector<16x384xf32>
      %17 = vector.extract_strided_slice %16 {offsets = [0, 0], sizes = [16, 128], strides = [1, 1]} : vector<16x384xf32> to vector<16x128xf32>
      %cst_10 = arith.constant dense<0.000000e+00> : vector<16xf32>
      %18 = vector.multi_reduction <add>, %17, %cst_10 [1] : vector<16x128xf32> to vector<16xf32>
      %19 = vector.shape_cast %18 : vector<16xf32> to vector<16x1xf32>
      %cst_11 = arith.constant 1.280000e+02 : f32
      %20 = vector.broadcast %cst_11 : f32 to vector<16x1xf32>
      %21 = arith.divf %19, %20 : vector<16x1xf32>
      %22 = vector.broadcast %21 : vector<16x1xf32> to vector<16x128xf32>
      %23 = arith.subf %17, %22 : vector<16x128xf32>
      %24 = arith.mulf %23, %23 : vector<16x128xf32>
      %cst_12 = arith.constant dense<0.000000e+00> : vector<16xf32>
      %25 = vector.multi_reduction <add>, %24, %cst_12 [1] : vector<16x128xf32> to vector<16xf32>
      %26 = vector.shape_cast %25 : vector<16xf32> to vector<16x1xf32>
      %cst_13 = arith.constant 1.280000e+02 : f32
      %27 = vector.broadcast %cst_13 : f32 to vector<16x1xf32>
      %28 = arith.divf %26, %27 : vector<16x1xf32>
      %29 = vector.broadcast %21 : vector<16x1xf32> to vector<16x128xf32>
      %30 = arith.subf %17, %29 : vector<16x128xf32>
      %cst_14 = arith.constant 9.99999974E-6 : f32
      %31 = vector.broadcast %cst_14 : f32 to vector<16x1xf32>
      %32 = arith.addf %28, %31 : vector<16x1xf32>
      %33 = math.rsqrt %32 : vector<16x1xf32>
      %34 = vector.broadcast %33 : vector<16x1xf32> to vector<16x128xf32>
      %35 = arith.mulf %30, %34 : vector<16x128xf32>
      %36 = vector.extract_strided_slice %16 {offsets = [0, 128], sizes = [16, 128], strides = [1, 1]} : vector<16x384xf32> to vector<16x128xf32>
      %cst_15 = arith.constant dense<0.000000e+00> : vector<16xf32>
      %37 = vector.multi_reduction <add>, %36, %cst_15 [1] : vector<16x128xf32> to vector<16xf32>
      %38 = vector.shape_cast %37 : vector<16xf32> to vector<16x1xf32>
      %cst_16 = arith.constant 1.280000e+02 : f32
      %39 = vector.broadcast %cst_16 : f32 to vector<16x1xf32>
      %40 = arith.divf %38, %39 : vector<16x1xf32>
      %41 = vector.broadcast %40 : vector<16x1xf32> to vector<16x128xf32>
      %42 = arith.subf %36, %41 : vector<16x128xf32>
      %43 = arith.mulf %42, %42 : vector<16x128xf32>
      %cst_17 = arith.constant dense<0.000000e+00> : vector<16xf32>
      %44 = vector.multi_reduction <add>, %43, %cst_17 [1] : vector<16x128xf32> to vector<16xf32>
      %45 = vector.shape_cast %44 : vector<16xf32> to vector<16x1xf32>
      %cst_18 = arith.constant 1.280000e+02 : f32
      %46 = vector.broadcast %cst_18 : f32 to vector<16x1xf32>
      %47 = arith.divf %45, %46 : vector<16x1xf32>
      %48 = vector.broadcast %40 : vector<16x1xf32> to vector<16x128xf32>
      %49 = arith.subf %36, %48 : vector<16x128xf32>
      %cst_19 = arith.constant 9.99999974E-6 : f32
      %50 = vector.broadcast %cst_19 : f32 to vector<16x1xf32>
      %51 = arith.addf %47, %50 : vector<16x1xf32>
      %52 = math.rsqrt %51 : vector<16x1xf32>
      %53 = vector.broadcast %52 : vector<16x1xf32> to vector<16x128xf32>
      %54 = arith.mulf %49, %53 : vector<16x128xf32>
      %55 = vector.extract_strided_slice %16 {offsets = [0, 256], sizes = [16, 128], strides = [1, 1]} : vector<16x384xf32> to vector<16x128xf32>
      %cst_20 = arith.constant dense<0.000000e+00> : vector<16x16xf32>
      %56 = tpu.matmul %35, %54, %cst_20 {dimension_numbers = #tpu.dot_dimension_numbers<[1], [1], [0], [0], [0, 0, 1, 0], [], []>} : vector<16x128xf32>, vector<16x128xf32>, vector<16x16xf32> -> vector<16x16xf32>
      %cst_21 = arith.constant 6.250000e-02 : f32
      %57 = vector.broadcast %cst_21 : f32 to vector<16x16xf32>
      %58 = arith.mulf %56, %57 : vector<16x16xf32>
      %cst_22 = arith.constant dense<0xFF800000> : vector<16xf32>
      %59 = vector.multi_reduction <maximumf>, %58, %cst_22 [1] : vector<16x16xf32> to vector<16xf32>
      %60 = vector.shape_cast %59 : vector<16xf32> to vector<16x1xf32>
      %61 = vector.broadcast %60 : vector<16x1xf32> to vector<16x16xf32>
      %62 = arith.subf %58, %61 : vector<16x16xf32>
      %63 = math.exp %62 : vector<16x16xf32>
      %cst_23 = arith.constant dense<0.000000e+00> : vector<16xf32>
      %64 = vector.multi_reduction <add>, %63, %cst_23 [1] : vector<16x16xf32> to vector<16xf32>
      %65 = vector.shape_cast %64 : vector<16xf32> to vector<16x1xf32>
      %66 = vector.broadcast %65 : vector<16x1xf32> to vector<16x16xf32>
      %67 = arith.divf %63, %66 : vector<16x16xf32>
      %cst_24 = arith.constant dense<0.000000e+00> : vector<16x128xf32>
      %68 = tpu.matmul %67, %55, %cst_24 {dimension_numbers = #tpu.dot_dimension_numbers<[1], [0], [0], [1], [0, 0, 1, 1], [], []>} : vector<16x16xf32>, vector<16x128xf32>, vector<16x128xf32> -> vector<16x128xf32>
      %c0_25 = arith.constant 0 : index
      %c0_26 = arith.constant 0 : index
      %69 = vector.load %arg11[%c0_25, %c0_26] : memref<16x256xf32, #tpu.memory_space<vmem>>, vector<16x256xf32>
      %c0_27 = arith.constant 0 : index
      %c0_28 = arith.constant 0 : index
      %c0_29 = arith.constant 0 : index
      %70 = vector.load %arg4[%c0_27, %c0_28, %c0_29] : memref<1x128x256xf32, #tpu.memory_space<vmem>>, vector<1x128x256xf32>
      %71 = vector.shape_cast %70 : vector<1x128x256xf32> to vector<128x256xf32>
      %cst_30 = arith.constant dense<0.000000e+00> : vector<16x256xf32>
      %72 = tpu.matmul %68, %71, %cst_30 {dimension_numbers = #tpu.dot_dimension_numbers<[1], [0], [0], [1], [0, 0, 1, 1], [], []>} : vector<16x128xf32>, vector<128x256xf32>, vector<16x256xf32> -> vector<16x256xf32>
      %73 = arith.addf %69, %72 : vector<16x256xf32>
      %c0_31 = arith.constant 0 : index
      %c0_32 = arith.constant 0 : index
      %74 = vector.load %arg11[%c0_31, %c0_32] : memref<16x256xf32, #tpu.memory_space<vmem>>, vector<16x256xf32>
      tpu.vector_store %arg11[%c0_31, %c0_32], %73 {strides = array<i32>} : memref<16x256xf32, #tpu.memory_space<vmem>>, vector<16x256xf32>,
    } else {
    }
    %c2_i32_4 = arith.constant 2 : i32
    %8 = arith.cmpi slt, %arg1, %c2_i32_4 : i32
    %9 = arith.extui %8 : i1 to i32
    %c0_i32_5 = arith.constant 0 : i32
    %10 = arith.cmpi ne, %9, %c0_i32_5 : i32
    scf.if %10 {
      %c0_7 = arith.constant 0 : index
      %c0_8 = arith.constant 0 : index
      %14 = vector.load %arg6[%c0_7, %c0_8] : memref<256x512xf32, #tpu.memory_space<vmem>>, vector<256x512xf32>
      %cst = arith.constant dense<0.000000e+00> : vector<16x512xf32>
      %15 = tpu.matmul %4, %14, %cst {dimension_numbers = #tpu.dot_dimension_numbers<[1], [0], [0], [1], [0, 0, 1, 1], [], []>} : vector<16x256xf32>, vector<256x512xf32>, vector<16x512xf32> -> vector<16x512xf32>
      %c0_9 = arith.constant 0 : index
      %c0_10 = arith.constant 0 : index
      %16 = vector.load %arg7[%c0_9, %c0_10] : memref<1x512xf32, #tpu.memory_space<vmem>>, vector<1x512xf32>
      %17 = vector.broadcast %16 : vector<1x512xf32> to vector<16x512xf32>
      %18 = arith.addf %15, %17 : vector<16x512xf32>
      %cst_11 = arith.constant 5.000000e-01 : f32
      %19 = vector.broadcast %cst_11 : f32 to vector<16x512xf32>
      %20 = arith.mulf %19, %18 : vector<16x512xf32>
      %cst_12 = arith.constant 0.707106769 : f32
      %21 = vector.broadcast %cst_12 : f32 to vector<16x512xf32>
      %22 = arith.mulf %18, %21 : vector<16x512xf32>
      %23 = math.absf %22 : vector<16x512xf32>
      %cst_13 = arith.constant 0.327591091 : f32
      %24 = vector.broadcast %cst_13 : f32 to vector<16x512xf32>
      %25 = arith.mulf %24, %23 : vector<16x512xf32>
      %cst_14 = arith.constant 1.000000e+00 : f32
      %26 = vector.broadcast %cst_14 : f32 to vector<16x512xf32>
      %27 = arith.addf %26, %25 : vector<16x512xf32>
      %cst_15 = arith.constant 1.000000e+00 : f32
      %28 = vector.broadcast %cst_15 : f32 to vector<16x512xf32>
      %29 = arith.divf %28, %27 : vector<16x512xf32>
      %cst_16 = arith.constant 1.06140542 : f32
      %30 = vector.broadcast %cst_16 : f32 to vector<16x512xf32>
      %31 = arith.mulf %30, %29 : vector<16x512xf32>
      %cst_17 = arith.constant -1.45315206 : f32
      %32 = vector.broadcast %cst_17 : f32 to vector<16x512xf32>
      %33 = arith.addf %31, %32 : vector<16x512xf32>
      %34 = arith.mulf %33, %29 : vector<16x512xf32>
      %cst_18 = arith.constant 1.42141378 : f32
      %35 = vector.broadcast %cst_18 : f32 to vector<16x512xf32>
      %36 = arith.addf %34, %35 : vector<16x512xf32>
      %37 = arith.mulf %36, %29 : vector<16x512xf32>
      %cst_19 = arith.constant -0.284496725 : f32
      %38 = vector.broadcast %cst_19 : f32 to vector<16x512xf32>
      %39 = arith.addf %37, %38 : vector<16x512xf32>
      %40 = arith.mulf %39, %29 : vector<16x512xf32>
      %cst_20 = arith.constant 0.254829586 : f32
      %41 = vector.broadcast %cst_20 : f32 to vector<16x512xf32>
      %42 = arith.addf %40, %41 : vector<16x512xf32>
      %43 = arith.mulf %42, %29 : vector<16x512xf32>
      %cst_21 = arith.constant 0.000000e+00 : f32
      %44 = vector.broadcast %cst_21 : f32 to vector<16x512xf32>
      %45 = arith.subf %44, %23 : vector<16x512xf32>
      %46 = arith.mulf %45, %23 : vector<16x512xf32>
      %47 = math.exp %46 : vector<16x512xf32>
      %48 = arith.mulf %43, %47 : vector<16x512xf32>
      %cst_22 = arith.constant 1.000000e+00 : f32
      %49 = vector.broadcast %cst_22 : f32 to vector<16x512xf32>
      %50 = arith.subf %49, %48 : vector<16x512xf32>
      %cst_23 = arith.constant 0.000000e+00 : f32
      %51 = vector.broadcast %cst_23 : f32 to vector<16x512xf32>
      %52 = arith.cmpf oge, %22, %51 : vector<16x512xf32>
      %cst_24 = arith.constant 0.000000e+00 : f32
      %53 = vector.broadcast %cst_24 : f32 to vector<16x512xf32>
      %54 = arith.subf %53, %50 : vector<16x512xf32>
      %55 = arith.select %52, %50, %54 : vector<16x512xi1>, vector<16x512xf32>
      %cst_25 = arith.constant 1.000000e+00 : f32
      %56 = vector.broadcast %cst_25 : f32 to vector<16x512xf32>
      %57 = arith.addf %56, %55 : vector<16x512xf32>
      %58 = arith.mulf %20, %57 : vector<16x512xf32>
      %c0_26 = arith.constant 0 : index
      %c0_27 = arith.constant 0 : index
      %59 = vector.load %arg11[%c0_26, %c0_27] : memref<16x256xf32, #tpu.memory_space<vmem>>, vector<16x256xf32>
      %c0_28 = arith.constant 0 : index
      %c0_29 = arith.constant 0 : index
      %60 = vector.load %arg8[%c0_28, %c0_29] : memref<512x256xf32, #tpu.memory_space<vmem>>, vector<512x256xf32>
      %cst_30 = arith.constant dense<0.000000e+00> : vector<16x256xf32>
      %61 = tpu.matmul %58, %60, %cst_30 {dimension_numbers = #tpu.dot_dimension_numbers<[1], [0], [0], [1], [0, 0, 1, 1], [], []>} : vector<16x512xf32>, vector<512x256xf32>, vector<16x256xf32> -> vector<16x256xf32>
      %62 = arith.addf %59, %61 : vector<16x256xf32>
      %c0_31 = arith.constant 0 : index
      %c0_32 = arith.constant 0 : index
      %63 = vector.load %arg11[%c0_31, %c0_32] : memref<16x256xf32, #tpu.memory_space<vmem>>, vector<16x256xf32>
      tpu.vector_store %arg11[%c0_31, %c0_32], %62 {strides = array<i32>} : memref<16x256xf32, #tpu.memory_space<vmem>>, vector<16x256xf32>,
    } else {
    }
    %c1_i32 = arith.constant 1 : i32
    %11 = arith.cmpi eq, %arg1, %c1_i32 : i32
    %12 = arith.extui %11 : i1 to i32
    %c0_i32_6 = arith.constant 0 : i32
    %13 = arith.cmpi ne, %12, %c0_i32_6 : i32
    scf.if %13 {
      %c0_7 = arith.constant 0 : index
      %c0_8 = arith.constant 0 : index
      %14 = vector.load %arg11[%c0_7, %c0_8] : memref<16x256xf32, #tpu.memory_space<vmem>>, vector<16x256xf32>
      %c0_9 = arith.constant 0 : index
      %c0_10 = arith.constant 0 : index
      %15 = vector.load %arg5[%c0_9, %c0_10] : memref<1x256xf32, #tpu.memory_space<vmem>>, vector<1x256xf32>
      %16 = vector.broadcast %15 : vector<1x256xf32> to vector<16x256xf32>
      %17 = arith.addf %14, %16 : vector<16x256xf32>
      %c0_11 = arith.constant 0 : index
      %c0_12 = arith.constant 0 : index
      %18 = vector.load %arg9[%c0_11, %c0_12] : memref<1x256xf32, #tpu.memory_space<vmem>>, vector<1x256xf32>
      %19 = vector.broadcast %18 : vector<1x256xf32> to vector<16x256xf32>
      %20 = arith.addf %17, %19 : vector<16x256xf32>
      %cst = arith.constant dense<0.000000e+00> : vector<16xf32>
      %21 = vector.multi_reduction <add>, %20, %cst [1] : vector<16x256xf32> to vector<16xf32>
      %22 = vector.shape_cast %21 : vector<16xf32> to vector<16x1xf32>
      %cst_13 = arith.constant 2.560000e+02 : f32
      %23 = vector.broadcast %cst_13 : f32 to vector<16x1xf32>
      %24 = arith.divf %22, %23 : vector<16x1xf32>
      %25 = vector.broadcast %24 : vector<16x1xf32> to vector<16x256xf32>
      %26 = arith.subf %20, %25 : vector<16x256xf32>
      %27 = arith.mulf %26, %26 : vector<16x256xf32>
      %cst_14 = arith.constant dense<0.000000e+00> : vector<16xf32>
      %28 = vector.multi_reduction <add>, %27, %cst_14 [1] : vector<16x256xf32> to vector<16xf32>
      %29 = vector.shape_cast %28 : vector<16xf32> to vector<16x1xf32>
      %cst_15 = arith.constant 2.560000e+02 : f32
      %30 = vector.broadcast %cst_15 : f32 to vector<16x1xf32>
      %31 = arith.divf %29, %30 : vector<16x1xf32>
      %32 = vector.broadcast %24 : vector<16x1xf32> to vector<16x256xf32>
      %33 = arith.subf %20, %32 : vector<16x256xf32>
      %cst_16 = arith.constant 9.99999974E-6 : f32
      %34 = vector.broadcast %cst_16 : f32 to vector<16x1xf32>
      %35 = arith.addf %31, %34 : vector<16x1xf32>
      %36 = math.rsqrt %35 : vector<16x1xf32>
      %37 = vector.broadcast %36 : vector<16x1xf32> to vector<16x256xf32>
      %38 = arith.mulf %33, %37 : vector<16x256xf32>
      %c0_17 = arith.constant 0 : index
      %c0_18 = arith.constant 0 : index
      %c0_19 = arith.constant 0 : index
      %39 = vector.load %arg10[%c0_17, %c0_18, %c0_19] : memref<1x16x256xf32, #tpu.memory_space<vmem>>, vector<1x16x256xf32>
      %40 = vector.shape_cast %39 : vector<1x16x256xf32> to vector<16x256xf32>
      %41 = vector.shape_cast %38 : vector<16x256xf32> to vector<1x16x256xf32>
      tpu.vector_store %arg10[%c0_17, %c0_18, %c0_19], %41 {strides = array<i32>} : memref<1x16x256xf32, #tpu.memory_space<vmem>>, vector<1x16x256xf32>,
    } else {
    }
    return
  }
  func.func @transform_0(%arg0: i32, %arg1: i32) -> (i32, i32, i32) {
    %c0_i32 = arith.constant 0 : i32
    %c0_i32_0 = arith.constant 0 : i32
    %c0_i32_1 = arith.constant 0 : i32
    return %arg0, %c0_i32, %c0_i32_0 : i32, i32, i32
  }
  func.func @transform_1(%arg0: i32, %arg1: i32) -> (i32, i32, i32) {
    %c1_i32 = arith.constant 1 : i32
    %0 = arith.minsi %arg1, %c1_i32 : i32
    %c0_i32 = arith.constant 0 : i32
    %c0_i32_0 = arith.constant 0 : i32
    %c0_i32_1 = arith.constant 0 : i32
    return %0, %c0_i32, %c0_i32_0 : i32, i32, i32
  }
  func.func @transform_2(%arg0: i32, %arg1: i32) -> (i32, i32, i32) {
    %c1_i32 = arith.constant 1 : i32
    %0 = arith.minsi %arg1, %c1_i32 : i32
    %c0_i32 = arith.constant 0 : i32
    %c0_i32_0 = arith.constant 0 : i32
    %c0_i32_1 = arith.constant 0 : i32
    return %0, %c0_i32, %c0_i32_0 : i32, i32, i32
  }
  func.func @transform_3(%arg0: i32, %arg1: i32) -> (i32, i32) {
    %c0_i32 = arith.constant 0 : i32
    %c0_i32_0 = arith.constant 0 : i32
    %c0_i32_1 = arith.constant 0 : i32
    return %c0_i32, %c0_i32_0 : i32, i32
  }
  func.func @transform_4(%arg0: i32, %arg1: i32) -> (i32, i32) {
    %c1_i32 = arith.constant 1 : i32
    %0 = arith.minsi %arg1, %c1_i32 : i32
    %c0_i32 = arith.constant 0 : i32
    %c0_i32_0 = arith.constant 0 : i32
    return %c0_i32, %0 : i32, i32
  }
  func.func @transform_5(%arg0: i32, %arg1: i32) -> (i32, i32) {
    %c1_i32 = arith.constant 1 : i32
    %0 = arith.minsi %arg1, %c1_i32 : i32
    %c0_i32 = arith.constant 0 : i32
    %c0_i32_0 = arith.constant 0 : i32
    return %c0_i32, %0 : i32, i32
  }
  func.func @transform_6(%arg0: i32, %arg1: i32) -> (i32, i32) {
    %c1_i32 = arith.constant 1 : i32
    %0 = arith.minsi %arg1, %c1_i32 : i32
    %c0_i32 = arith.constant 0 : i32
    %c0_i32_0 = arith.constant 0 : i32
    return %0, %c0_i32 : i32, i32
  }
  func.func @transform_7(%arg0: i32, %arg1: i32) -> (i32, i32) {
    %c0_i32 = arith.constant 0 : i32
    %c0_i32_0 = arith.constant 0 : i32
    %c0_i32_1 = arith.constant 0 : i32
    return %c0_i32, %c0_i32_0 : i32, i32
  }
  func.func @transform_8(%arg0: i32, %arg1: i32) -> (i32, i32, i32) {
    %c0_i32 = arith.constant 0 : i32
    %c0_i32_0 = arith.constant 0 : i32
    %c0_i32_1 = arith.constant 0 : i32
    return %arg0, %c0_i32, %c0_i32_0 : i32, i32, i32
  }
}

</mosaic_0001>

<llo_original>
// kernel: tpu_custom_call.1
$region0: #{tpu_custom_call.1}
  #allocation0 [shape = 'u32[]', space=smem, size = 0x4, offset = 0x4, fixed_abs, tag = 'smem constant byte address 0x4 - core index']
  #allocation1 [shape = 'u32[144,128]{1,0:T(1,128)}', space=vmem, size = 0x12000, scoped, tag = 'internal scratch']
  #allocation2 [shape = 'f32[16,256]{1,0:T(8,128)}', space=vmem, size = 0x4000, scoped, tag = 'scratch operand']
  %s0 = inlined_call_operand.hbm [shape: f32[2,16,256], index: 0, kind: input, shape index: {}]
  %s1 = inlined_call_operand.hbm [shape: f32[2,256,384], index: 1, kind: input, shape index: {}]
  %s2 = inlined_call_operand.hbm [shape: f32[2,128,256], index: 2, kind: input, shape index: {}]
  %s3 = inlined_call_operand.vmem [shape: f32[1,256], index: 3, kind: input, shape index: {}]
  %s4 = inlined_call_operand.hbm [shape: f32[256,1024], index: 4, kind: input, shape index: {}]
  %s5 = inlined_call_operand.vmem [shape: f32[1,1024], index: 5, kind: input, shape index: {}]
  %s6 = inlined_call_operand.hbm [shape: f32[1024,256], index: 6, kind: input, shape index: {}]
  %s7 = inlined_call_operand.vmem [shape: f32[1,256], index: 7, kind: input, shape index: {}]
  %s8 = inlined_call_operand.hbm [shape: f32[2,16,256], index: 8, kind: output, shape index: {}]
  %s9 = sld [smem:[#allocation0]]
  $region97: #{tpu_custom_call.1} parent=0
    _
  %s11 = ssub.s32 1, %s9
  %s12 = scalar_select 0, %s11, %s9
  $region1: #{tpu_custom_call.1} parent=0
    #allocation3 [shape = 'u8[32768]{0}', space=vmem, size = 0x8000, scoped, tag = 'input window, operand 0']
    #allocation4 [shape = 's32[2]{0}', space=sflag, size = 0x8, scoped, tag = 'scoped memory for tpu_custom_call.1']
    #allocation5 [shape = 's32[2]{0}', space=sflag, size = 0x8, scoped, tag = 'scoped memory for tpu_custom_call.1']
    #allocation6 [shape = 'u8[786432]{0}', space=vmem, size = 0xc0000, scoped, tag = 'input window, operand 1']
    #allocation7 [shape = 's32[2]{0}', space=sflag, size = 0x8, scoped, tag = 'scoped memory for tpu_custom_call.1']
    #allocation8 [shape = 'u8[262144]{0}', space=vmem, size = 0x40000, scoped, tag = 'input window, operand 2']
    #allocation9 [shape = 'u8[1048576]{0}', space=vmem, size = 0x100000, scoped, tag = 'input window, operand 4']
    #allocation10 [shape = 's32[2]{0}', space=sflag, size = 0x8, scoped, tag = 'scoped memory for tpu_custom_call.1']
    #allocation11 [shape = 'u8[1048576]{0}', space=vmem, size = 0x100000, scoped, tag = 'input window, operand 6']
    #allocation12 [shape = 'u8[32768]{0}', space=vmem, size = 0x8000, scoped, tag = 'output window, operand 0']
    %13 = vsyncpa [#allocation4], 0
    %s14 = scalar_lea.sflag [#allocation4], 1
    %15 = vsyncpa %s14, 0
    %16 = vsyncpa [#allocation7], 0
    %s17 = scalar_lea.sflag [#allocation7], 1
    %18 = vsyncpa %s17, 0
    %19 = vsyncpa [#allocation10], 0
    %s20 = scalar_lea.sflag [#allocation10], 1
    %21 = vsyncpa %s20, 0
    %22 = vsyncpa [#allocation5], 0
    %s23 = scalar_lea.sflag [#allocation5], 1
    %24 = vsyncpa %s23, 0
    loop: start=0, step=1, limit=6
    $region2: #{tpu_custom_call.1} parent=1 // loop_pre_header
      _
    $region3: #{tpu_custom_call.1} parent=1 // loop_header
      %s26 = sphi 0, %s30
      %p27 = scmp.ge.s32.totalorder %s26, 6
      %s33 = sphi 0, %s45
      %s34 = sphi 0, %s41
      %s35 = sphi 0, %s33
      %s36 = sphi 0, %s34
      %s37 = sphi 0, %s35
      %s38 = sphi 0, %s36
      %s48 = sphi 0, %s50
      %s51 = sphi 0, %s48
      %s52 = sphi 0, %s51
      %s68 = sphi 0, %s52
      %s78 = sphi 0, %s80
      %s81 = sphi 0, %s78
      %s82 = sphi 0, %s81
      %s98 = sphi 0, %s82
      %s108 = sphi 0, %s110
      %s111 = sphi 0, %s108
      %s112 = sphi 0, %s111
      %s128 = sphi 0, %s112
      %s132 = sphi 0, %s132
      %s134 = sphi 0, %s132
      %s135 = sphi 0, %s134
      %s149 = sphi 0, %s135
      %s159 = sphi 0, %s161
      %s162 = sphi 0, %s159
      %s163 = sphi 0, %s162
      %s179 = sphi 0, %s163
      %s189 = sphi 0, %s191
      %s192 = sphi 0, %s189
      %s193 = sphi 0, %s192
      %s209 = sphi 0, %s193
      %s219 = sphi 0, %s221
      %s222 = sphi 0, %s219
      %s223 = sphi 0, %s222
      %s239 = sphi 0, %s223
      %s243 = sphi 0, %s243
      %s245 = sphi 0, %s243
      %s246 = sphi 0, %s245
      %s260 = sphi 0, %s246
      %s266 = sphi 0, %s268
      %s269 = sphi 0, %s266
      %s270 = sphi 0, %s269
      %s286 = sphi 0, %s270
    $region4: #{tpu_custom_call.1} parent=1 // loop_header_branch
      %29 = sbr.rel (%p27) target = $region8
    $region5: #{tpu_custom_call.1} parent=1 // loop_body
      %s31 = ssub.s32 %s26, 1
      %s32 = ssub.s32 %s26, 2
      %s39 = sadd.s32 1, %s34
      %p40 = scmp.ge.s32.totalorder %s39, 2
      %s41 = scalar_select %p40, 0, %s39
      %s42 = sadd.s32 1, %s33
      %s43 = scalar_select %p40, %s42, %s33
      %p44 = scmp.ge.s32.totalorder %s43, 2
      %s45 = scalar_select %p44, 0, %s43
      %s46 = ssub.s32 %s33, %s45
      %p47 = scmp.eq.s32.totalorder %s46, 0
      %s49 = sadd.s32 %s48, 1
      %s50 = scalar_select %p47, %s48, %s49
      %p53 = pneg %p47
      %p54 = scmp.eq.s32.totalorder %s26, 3
      %p55 = por %p53, %p54
      %p56 = scmp.ne.s32.totalorder %s48, %s51
      %p57 = scmp.eq.s32.totalorder %s26, 0
      %p58 = por %p56, %p57
      %p59 = scmp.ne.s32.totalorder %s48, %s51
      %p60 = scmp.eq.s32.totalorder %s31, 3
      %p61 = por %p59, %p60
      %p62 = scmp.ne.s32.totalorder %s51, %s52
      %p63 = scmp.eq.s32.totalorder %s31, 0
      %p64 = por %p62, %p63
      %p65 = scmp.ne.s32.totalorder %s51, %s52
      %p66 = scmp.eq.s32.totalorder %s32, 3
      %p67 = por %p65, %p66
      %p69 = scmp.ne.s32.totalorder %s52, %s68
      %p70 = scmp.eq.s32.totalorder %s32, 0
      %p71 = por %p69, %p70
      %p72 = scmp.lt.s32.totalorder %s34, 1
      %s73 = scalar_select %p72, %s34, 1
      %p74 = scmp.lt.s32.totalorder %s41, 1
      %s75 = scalar_select %p74, %s41, 1
      %s76 = ssub.s32 %s73, %s75
      %p77 = scmp.eq.s32.totalorder %s76, 0
      %s79 = sadd.s32 %s78, 1
      %s80 = scalar_select %p77, %s78, %s79
      %p83 = pneg %p77
      %p84 = scmp.eq.s32.totalorder %s26, 3
      %p85 = por %p83, %p84
      %p86 = scmp.ne.s32.totalorder %s78, %s81
      %p87 = scmp.eq.s32.totalorder %s26, 0
      %p88 = por %p86, %p87
      %p89 = scmp.ne.s32.totalorder %s78, %s81
      %p90 = scmp.eq.s32.totalorder %s31, 3
      %p91 = por %p89, %p90
      %p92 = scmp.ne.s32.totalorder %s81, %s82
      %p93 = scmp.eq.s32.totalorder %s31, 0
      %p94 = por %p92, %p93
      %p95 = scmp.ne.s32.totalorder %s81, %s82
      %p96 = scmp.eq.s32.totalorder %s32, 3
      %p97 = por %p95, %p96
      %p99 = scmp.ne.s32.totalorder %s82, %s98
      %p100 = scmp.eq.s32.totalorder %s32, 0
      %p101 = por %p99, %p100
      %p102 = scmp.lt.s32.totalorder %s34, 1
      %s103 = scalar_select %p102, %s34, 1
      %p104 = scmp.lt.s32.totalorder %s41, 1
      %s105 = scalar_select %p104, %s41, 1
      %s106 = ssub.s32 %s103, %s105
      %p107 = scmp.eq.s32.totalorder %s106, 0
      %s109 = sadd.s32 %s108, 1
      %s110 = scalar_select %p107, %s108, %s109
      %p113 = pneg %p107
      %p114 = scmp.eq.s32.totalorder %s26, 3
      %p115 = por %p113, %p114
      %p116 = scmp.ne.s32.totalorder %s108, %s111
      %p117 = scmp.eq.s32.totalorder %s26, 0
      %p118 = por %p116, %p117
      %p119 = scmp.ne.s32.totalorder %s108, %s111
      %p120 = scmp.eq.s32.totalorder %s31, 3
      %p121 = por %p119, %p120
      %p122 = scmp.ne.s32.totalorder %s111, %s112
      %p123 = scmp.eq.s32.totalorder %s31, 0
      %p124 = por %p122, %p123
      %p125 = scmp.ne.s32.totalorder %s111, %s112
      %p126 = scmp.eq.s32.totalorder %s32, 3
      %p127 = por %p125, %p126
      %p129 = scmp.ne.s32.totalorder %s112, %s128
      %p130 = scmp.eq.s32.totalorder %s32, 0
      %p131 = por %p129, %p130
      %s133 = sadd.s32 %s132, 1
      %p136 = scmp.eq.s32.totalorder %s26, 3
      %p137 = scmp.ne.s32.totalorder %s132, %s134
      %p138 = scmp.eq.s32.totalorder %s26, 0
      %p139 = por %p137, %p138
      %p140 = scmp.ne.s32.totalorder %s132, %s134
      %p141 = scmp.eq.s32.totalorder %s31, 3
      %p142 = por %p140, %p141
      %p143 = scmp.ne.s32.totalorder %s134, %s135
      %p144 = scmp.eq.s32.totalorder %s31, 0
      %p145 = por %p143, %p144
      %p146 = scmp.ne.s32.totalorder %s134, %s135
      %p147 = scmp.eq.s32.totalorder %s32, 3
      %p148 = por %p146, %p147
      %p150 = scmp.ne.s32.totalorder %s135, %s149
      %p151 = scmp.eq.s32.totalorder %s32, 0
      %p152 = por %p150, %p151
      %p153 = scmp.lt.s32.totalorder %s34, 1
      %s154 = scalar_select %p153, %s34, 1
      %p155 = scmp.lt.s32.totalorder %s41, 1
      %s156 = scalar_select %p155, %s41, 1
      %s157 = ssub.s32 %s154, %s156
      %p158 = scmp.eq.s32.totalorder %s157, 0
      %s160 = sadd.s32 %s159, 1
      %s161 = scalar_select %p158, %s159, %s160
      %p164 = pneg %p158
      %p165 = scmp.eq.s32.totalorder %s26, 3
      %p166 = por %p164, %p165
      %p167 = scmp.ne.s32.totalorder %s159, %s162
      %p168 = scmp.eq.s32.totalorder %s26, 0
      %p169 = por %p167, %p168
      %p170 = scmp.ne.s32.totalorder %s159, %s162
      %p171 = scmp.eq.s32.totalorder %s31, 3
      %p172 = por %p170, %p171
      %p173 = scmp.ne.s32.totalorder %s162, %s163
      %p174 = scmp.eq.s32.totalorder %s31, 0
      %p175 = por %p173, %p174
      %p176 = scmp.ne.s32.totalorder %s162, %s163
      %p177 = scmp.eq.s32.totalorder %s32, 3
      %p178 = por %p176, %p177
      %p180 = scmp.ne.s32.totalorder %s163, %s179
      %p181 = scmp.eq.s32.totalorder %s32, 0
      %p182 = por %p180, %p181
      %p183 = scmp.lt.s32.totalorder %s34, 1
      %s184 = scalar_select %p183, %s34, 1
      %p185 = scmp.lt.s32.totalorder %s41, 1
      %s186 = scalar_select %p185, %s41, 1
      %s187 = ssub.s32 %s184, %s186
      %p188 = scmp.eq.s32.totalorder %s187, 0
      %s190 = sadd.s32 %s189, 1
      %s191 = scalar_select %p188, %s189, %s190
      %p194 = pneg %p188
      %p195 = scmp.eq.s32.totalorder %s26, 3
      %p196 = por %p194, %p195
      %p197 = scmp.ne.s32.totalorder %s189, %s192
      %p198 = scmp.eq.s32.totalorder %s26, 0
      %p199 = por %p197, %p198
      %p200 = scmp.ne.s32.totalorder %s189, %s192
      %p201 = scmp.eq.s32.totalorder %s31, 3
      %p202 = por %p200, %p201
      %p203 = scmp.ne.s32.totalorder %s192, %s193
      %p204 = scmp.eq.s32.totalorder %s31, 0
      %p205 = por %p203, %p204
      %p206 = scmp.ne.s32.totalorder %s192, %s193
      %p207 = scmp.eq.s32.totalorder %s32, 3
      %p208 = por %p206, %p207
      %p210 = scmp.ne.s32.totalorder %s193, %s209
      %p211 = scmp.eq.s32.totalorder %s32, 0
      %p212 = por %p210, %p211
      %p213 = scmp.lt.s32.totalorder %s34, 1
      %s214 = scalar_select %p213, %s34, 1
      %p215 = scmp.lt.s32.totalorder %s41, 1
      %s216 = scalar_select %p215, %s41, 1
      %s217 = ssub.s32 %s214, %s216
      %p218 = scmp.eq.s32.totalorder %s217, 0
      %s220 = sadd.s32 %s219, 1
      %s221 = scalar_select %p218, %s219, %s220
      %p224 = pneg %p218
      %p225 = scmp.eq.s32.totalorder %s26, 3
      %p226 = por %p224, %p225
      %p227 = scmp.ne.s32.totalorder %s219, %s222
      %p228 = scmp.eq.s32.totalorder %s26, 0
      %p229 = por %p227, %p228
      %p230 = scmp.ne.s32.totalorder %s219, %s222
      %p231 = scmp.eq.s32.totalorder %s31, 3
      %p232 = por %p230, %p231
      %p233 = scmp.ne.s32.totalorder %s222, %s223
      %p234 = scmp.eq.s32.totalorder %s31, 0
      %p235 = por %p233, %p234
      %p236 = scmp.ne.s32.totalorder %s222, %s223
      %p237 = scmp.eq.s32.totalorder %s32, 3
      %p238 = por %p236, %p237
      %p240 = scmp.ne.s32.totalorder %s223, %s239
      %p241 = scmp.eq.s32.totalorder %s32, 0
      %p242 = por %p240, %p241
      %s244 = sadd.s32 %s243, 1
      %p247 = scmp.eq.s32.totalorder %s26, 3
      %p248 = scmp.ne.s32.totalorder %s243, %s245
      %p249 = scmp.eq.s32.totalorder %s26, 0
      %p250 = por %p248, %p249
      %p251 = scmp.ne.s32.totalorder %s243, %s245
      %p252 = scmp.eq.s32.totalorder %s31, 3
      %p253 = por %p251, %p252
      %p254 = scmp.ne.s32.totalorder %s245, %s246
      %p255 = scmp.eq.s32.totalorder %s31, 0
      %p256 = por %p254, %p255
      %p257 = scmp.ne.s32.totalorder %s245, %s246
      %p258 = scmp.eq.s32.totalorder %s32, 3
      %p259 = por %p257, %p258
      %p261 = scmp.ne.s32.totalorder %s246, %s260
      %p262 = scmp.eq.s32.totalorder %s32, 0
      %p263 = por %p261, %p262
      %s264 = ssub.s32 %s33, %s45
      %p265 = scmp.eq.s32.totalorder %s264, 0
      %s267 = sadd.s32 %s266, 1
      %s268 = scalar_select %p265, %s266, %s267
      %p271 = pneg %p265
      %p272 = scmp.eq.s32.totalorder %s26, 3
      %p273 = por %p271, %p272
      %p274 = scmp.ne.s32.totalorder %s266, %s269
      %p275 = scmp.eq.s32.totalorder %s26, 0
      %p276 = por %p274, %p275
      %p277 = scmp.ne.s32.totalorder %s266, %s269
      %p278 = scmp.eq.s32.totalorder %s31, 3
      %p279 = por %p277, %p278
      %p280 = scmp.ne.s32.totalorder %s269, %s270
      %p281 = scmp.eq.s32.totalorder %s31, 0
      %p282 = por %p280, %p281
      %p283 = scmp.ne.s32.totalorder %s269, %s270
      %p284 = scmp.eq.s32.totalorder %s32, 3
      %p285 = por %p283, %p284
      %p287 = scmp.ne.s32.totalorder %s270, %s286
      %p288 = scmp.eq.s32.totalorder %s32, 0
      %p289 = por %p287, %p288
      %p290 = scmp.le.s32.totalorder 1, %s26
      %p291 = scmp.lt.s32.totalorder %s26, 5
      %p292 = pnand %p290, %p291
      %p293 = pneg %p292
      // Predicated region
      $region9: #{tpu_custom_call.1} parent=5 // pred_check
        _
      $region10: #{tpu_custom_call.1} parent=5 // pred_check_branch
        %295 = sbr.rel (%p292) target = $region12
      $region11: #{tpu_custom_call.1} parent=5 // pred_region
        %s296 = ssub.s32 %s26, 1
        // Predicated region
        $region13: #{tpu_custom_call.1} parent=11 // pred_check
          %p297 = pneg %p145
        $region14: #{tpu_custom_call.1} parent=11 // pred_check_branch
          %299 = sbr.rel (%p297) target = $region16
        $region15: #{tpu_custom_call.1} parent=11 // pred_region
          _
        $region16: #{tpu_custom_call.1} parent=11 // pred_fallthru
          _
        // Predicated region
        $region17: #{tpu_custom_call.1} parent=11 // pred_check
          %p300 = pneg %p256
        $region18: #{tpu_custom_call.1} parent=11 // pred_check_branch
          %302 = sbr.rel (%p300) target = $region20
        $region19: #{tpu_custom_call.1} parent=11 // pred_region
          _
        $region20: #{tpu_custom_call.1} parent=11 // pred_fallthru
          _
      $region12: #{tpu_custom_call.1} parent=5 // pred_fallthru
        _
      %p303 = scmp.lt.s32.totalorder %s26, 4
      // Predicated region
      $region21: #{tpu_custom_call.1} parent=5 // pred_check
        %p304 = pneg %p303
      $region22: #{tpu_custom_call.1} parent=5 // pred_check_branch
        %306 = sbr.rel (%p304) target = $region24
      $region23: #{tpu_custom_call.1} parent=5 // pred_region
        // Predicated region
        $region25: #{tpu_custom_call.1} parent=23 // pred_check
          %p307 = pneg %p58
        $region26: #{tpu_custom_call.1} parent=23 // pred_check_branch
          %309 = sbr.rel (%p307) target = $region28
        $region27: #{tpu_custom_call.1} parent=23 // pred_region
          %s310 = sand.u32 %s48, 1
          %s311 = scalar_lea.sflag [#allocation4], %s310
          %s312 = sand.u32 %s48, 1
          %s313 = smul.addr %s312, 32
          %s314 = scalar_lea.vmem [#allocation3], %s313
          %s316 = ssub.s32 512, 512
          %317 = vsyncadd %s311, %s316
          %s318 = smul.addr %s33, 4
          %s319 = smul.addr %s318, 128
          %s320 = scalar_lea.hbm %s0, %s319
          %s321 = sshll.u32 %s314, 4
          %s322 = int_to_ptr.vmem [resolvable:$true] %s321
          %327 = dma.hbm_to_vmem [thread:$0]  %s320, 512, %s322, %s311, 256, 256, 16
        $region28: #{tpu_custom_call.1} parent=23 // pred_fallthru
          _
        // Predicated region
        $region29: #{tpu_custom_call.1} parent=23 // pred_check
          %p328 = pneg %p88
        $region30: #{tpu_custom_call.1} parent=23 // pred_check_branch
          %330 = sbr.rel (%p328) target = $region32
        $region31: #{tpu_custom_call.1} parent=23 // pred_region
          %s331 = sand.u32 %s26, 1
          %s332 = scalar_lea.sflag [#allocation7], %s331
          %s333 = sand.u32 %s78, 1
          %s334 = smul.addr %s333, 768
          %s335 = scalar_lea.vmem [#allocation6], %s334
          %p336 = scmp.lt.s32.totalorder %s34, 1
          %s337 = scalar_select %p336, %s34, 1
          %s339 = ssub.s32 12288, 12288
          %340 = vsyncadd %s332, %s339
          %s341 = smul.addr %s337, 96
          %s342 = smul.addr %s341, 128
          %s343 = scalar_lea.hbm %s1, %s342
          %s344 = sshll.u32 %s335, 4
          %s345 = int_to_ptr.vmem [resolvable:$true] %s344
          %350 = dma.hbm_to_vmem [thread:$0]  %s343, 12288, %s345, %s332, 384, 384, 24
        $region32: #{tpu_custom_call.1} parent=23 // pred_fallthru
          _
        // Predicated region
        $region33: #{tpu_custom_call.1} parent=23 // pred_check
          %p351 = pneg %p118
        $region34: #{tpu_custom_call.1} parent=23 // pred_check_branch
          %353 = sbr.rel (%p351) target = $region36
        $region35: #{tpu_custom_call.1} parent=23 // pred_region
          %s354 = sand.u32 %s26, 1
          %s355 = scalar_lea.sflag [#allocation7], %s354
          %s356 = sand.u32 %s108, 1
          %s357 = smul.addr %s356, 256
          %s358 = scalar_lea.vmem [#allocation8], %s357
          %p359 = scmp.lt.s32.totalorder %s34, 1
          %s360 = scalar_select %p359, %s34, 1
          %s362 = ssub.s32 4096, 4096
          %363 = vsyncadd %s355, %s362
          %s364 = smul.addr %s360, 32
          %s365 = smul.addr %s364, 128
          %s366 = scalar_lea.hbm %s2, %s365
          %s367 = sshll.u32 %s358, 4
          %s368 = int_to_ptr.vmem [resolvable:$true] %s367
          %373 = dma.hbm_to_vmem [thread:$0]  %s366, 4096, %s368, %s355, 256, 256, 16
        $region36: #{tpu_custom_call.1} parent=23 // pred_fallthru
          _
        // Predicated region
        $region37: #{tpu_custom_call.1} parent=23 // pred_check
          %p374 = pneg %p169
        $region38: #{tpu_custom_call.1} parent=23 // pred_check_branch
          %376 = sbr.rel (%p374) target = $region40
        $region39: #{tpu_custom_call.1} parent=23 // pred_region
          %s377 = sand.u32 %s26, 1
          %s378 = scalar_lea.sflag [#allocation10], %s377
          %s379 = sand.u32 %s159, 1
          %s380 = smul.addr %s379, 1024
          %s381 = scalar_lea.vmem [#allocation9], %s380
          %p382 = scmp.lt.s32.totalorder %s34, 1
          %s383 = scalar_select %p382, %s34, 1
          %s384 = smul.u32 4, %s383
          %s386 = ssub.s32 16384, 16384
          %387 = vsyncadd %s378, %s386
          %s388 = smul.addr %s384, 128
          %s389 = scalar_lea.hbm %s4, %s388
          %s390 = sshll.u32 %s381, 4
          %s391 = int_to_ptr.vmem [resolvable:$true] %s390
          %396 = dma.hbm_to_vmem [thread:$0]  %s389, 16384, %s391, %s378, 1024, 512, 32
        $region40: #{tpu_custom_call.1} parent=23 // pred_fallthru
          _
        // Predicated region
        $region41: #{tpu_custom_call.1} parent=23 // pred_check
          %p397 = pneg %p199
        $region42: #{tpu_custom_call.1} parent=23 // pred_check_branch
          %399 = sbr.rel (%p397) target = $region44
        $region43: #{tpu_custom_call.1} parent=23 // pred_region
          %p400 = scmp.lt.s32.totalorder %s34, 1
          %s401 = scalar_select %p400, %s34, 1
          %s402 = smul.u32 4, %s401
          %p403 = scmp.lt.s32.totalorder %s402, 7
          %s404 = scalar_select %p403, %s402, 7
          %s405 = scalar_lea.vmem %s5, %s404
          %p406 = scmp.lt.s32.totalorder %s34, 1
          %s407 = scalar_select %p406, %s34, 1
          %s408 = smul.u32 4, %s407
        $region44: #{tpu_custom_call.1} parent=23 // pred_fallthru
          _
        // Predicated region
        $region45: #{tpu_custom_call.1} parent=23 // pred_check
          %p409 = pneg %p229
        $region46: #{tpu_custom_call.1} parent=23 // pred_check_branch
          %411 = sbr.rel (%p409) target = $region48
        $region47: #{tpu_custom_call.1} parent=23 // pred_region
          %s412 = sand.u32 %s26, 1
          %s413 = scalar_lea.sflag [#allocation10], %s412
          %s414 = sand.u32 %s219, 1
          %s415 = smul.addr %s414, 1024
          %s416 = scalar_lea.vmem [#allocation11], %s415
          %p417 = scmp.lt.s32.totalorder %s34, 1
          %s418 = scalar_select %p417, %s34, 1
          %s419 = smul.u32 64, %s418
          %s421 = ssub.s32 16384, 16384
          %422 = vsyncadd %s413, %s421
          %s423 = smul.addr %s419, 2
          %s424 = smul.addr %s423, 128
          %s425 = scalar_lea.hbm %s6, %s424
          %s426 = sshll.u32 %s416, 4
          %s427 = int_to_ptr.vmem [resolvable:$true] %s426
          %432 = dma.hbm_to_vmem [thread:$0]  %s425, 16384, %s427, %s413, 256, 256, 16
        $region48: #{tpu_custom_call.1} parent=23 // pred_fallthru
          _
      $region24: #{tpu_custom_call.1} parent=5 // pred_fallthru
        _
      %p433 = scmp.le.s32.totalorder 1, %s26
      %p434 = scmp.lt.s32.totalorder %s26, 5
      %p435 = pnand %p433, %p434
      %p436 = pneg %p435
      // Predicated region
      $region49: #{tpu_custom_call.1} parent=5 // pred_check
        _
      $region50: #{tpu_custom_call.1} parent=5 // pred_check_branch
        %438 = sbr.rel (%p435) target = $region52
      $region51: #{tpu_custom_call.1} parent=5 // pred_region
        %s439 = ssub.s32 %s26, 1
        %s440 = sand.u32 %s51, 1
        %s441 = scalar_lea.sflag [#allocation4], %s440
        %s442 = sand.u32 %s51, 1
        %s443 = smul.addr %s442, 32
        %s444 = scalar_lea.vmem [#allocation3], %s443
        // Predicated region
        $region53: #{tpu_custom_call.1} parent=51 // pred_check
          %p445 = pneg %p64
        $region54: #{tpu_custom_call.1} parent=51 // pred_check_branch
          %447 = sbr.rel (%p445) target = $region56
        $region55: #{tpu_custom_call.1} parent=51 // pred_region
          %448 = dma.done %s441, 512
        $region56: #{tpu_custom_call.1} parent=51 // pred_fallthru
          _
        %s449 = sand.u32 %s31, 1
        %s450 = scalar_lea.sflag [#allocation7], %s449
        %s451 = sand.u32 %s81, 1
        %s452 = smul.addr %s451, 768
        %s453 = scalar_lea.vmem [#allocation6], %s452
        // Predicated region
        $region57: #{tpu_custom_call.1} parent=51 // pred_check
          %p454 = pneg %p94
        $region58: #{tpu_custom_call.1} parent=51 // pred_check_branch
          %456 = sbr.rel (%p454) target = $region60
        $region59: #{tpu_custom_call.1} parent=51 // pred_region
          %457 = dma.done %s450, 12288
        $region60: #{tpu_custom_call.1} parent=51 // pred_fallthru
          _
        %s458 = sand.u32 %s31, 1
        %s459 = scalar_lea.sflag [#allocation7], %s458
        %s460 = sand.u32 %s111, 1
        %s461 = smul.addr %s460, 256
        %s462 = scalar_lea.vmem [#allocation8], %s461
        // Predicated region
        $region61: #{tpu_custom_call.1} parent=51 // pred_check
          %p463 = pneg %p124
        $region62: #{tpu_custom_call.1} parent=51 // pred_check_branch
          %465 = sbr.rel (%p463) target = $region64
        $region63: #{tpu_custom_call.1} parent=51 // pred_region
          %466 = dma.done %s459, 4096
        $region64: #{tpu_custom_call.1} parent=51 // pred_fallthru
          _
        %s467 = sand.u32 %s31, 1
        %s468 = scalar_lea.sflag [#allocation10], %s467
        %s469 = sand.u32 %s162, 1
        %s470 = smul.addr %s469, 1024
        %s471 = scalar_lea.vmem [#allocation9], %s470
        // Predicated region
        $region65: #{tpu_custom_call.1} parent=51 // pred_check
          %p472 = pneg %p175
        $region66: #{tpu_custom_call.1} parent=51 // pred_check_branch
          %474 = sbr.rel (%p472) target = $region68
        $region67: #{tpu_custom_call.1} parent=51 // pred_region
          %475 = dma.done %s468, 16384
        $region68: #{tpu_custom_call.1} parent=51 // pred_fallthru
          _
        %s476 = sand.u32 %s31, 1
        %s477 = scalar_lea.sflag [#allocation10], %s476
        %s478 = sand.u32 %s222, 1
        %s479 = smul.addr %s478, 1024
        %s480 = scalar_lea.vmem [#allocation11], %s479
        // Predicated region
        $region69: #{tpu_custom_call.1} parent=51 // pred_check
          %p481 = pneg %p235
        $region70: #{tpu_custom_call.1} parent=51 // pred_check_branch
          %483 = sbr.rel (%p481) target = $region72
        $region71: #{tpu_custom_call.1} parent=51 // pred_region
          %484 = dma.done %s477, 16384
        $region72: #{tpu_custom_call.1} parent=51 // pred_fallthru
          _
        %s485 = sand.u32 %s51, 1
        %s486 = scalar_lea.sflag [#allocation4], %s485
        %s487 = sand.u32 %s51, 1
        %s488 = smul.addr %s487, 32
        %s489 = scalar_lea.vmem [#allocation3], %s488
        %p490 = pneg %p64
        %p491 = pneg %p61
        %s492 = sand.u32 %s31, 1
        %s493 = scalar_lea.sflag [#allocation7], %s492
        %s494 = sand.u32 %s81, 1
        %s495 = smul.addr %s494, 768
        %s496 = scalar_lea.vmem [#allocation6], %s495
        %p497 = pneg %p94
        %p498 = pneg %p91
        %s499 = sand.u32 %s31, 1
        %s500 = scalar_lea.sflag [#allocation7], %s499
        %s501 = sand.u32 %s111, 1
        %s502 = smul.addr %s501, 256
        %s503 = scalar_lea.vmem [#allocation8], %s502
        %p504 = pneg %p124
        %p505 = pneg %p121
        %p506 = pneg %p145
        %p507 = pneg %p142
        %s508 = sand.u32 %s31, 1
        %s509 = scalar_lea.sflag [#allocation10], %s508
        %s510 = sand.u32 %s162, 1
        %s511 = smul.addr %s510, 1024
        %s512 = scalar_lea.vmem [#allocation9], %s511
        %p513 = pneg %p175
        %p514 = pneg %p172
        %p515 = scmp.lt.s32.totalorder %s36, 1
        %s516 = scalar_select %p515, %s36, 1
        %s517 = smul.u32 4, %s516
        %p518 = scmp.lt.s32.totalorder %s517, 7
        %s519 = scalar_select %p518, %s517, 7
        %s520 = scalar_lea.vmem %s5, %s519
        %p521 = pneg %p205
        %p522 = pneg %p202
        %s523 = sand.u32 %s31, 1
        %s524 = scalar_lea.sflag [#allocation10], %s523
        %s525 = sand.u32 %s222, 1
        %s526 = smul.addr %s525, 1024
        %s527 = scalar_lea.vmem [#allocation11], %s526
        %p528 = pneg %p235
        %p529 = pneg %p232
        %p530 = pneg %p256
        %p531 = pneg %p253
        %p532 = pneg %p282
        %p533 = pneg %p279
        %s534 = sand.u32 %s269, 1
        %s535 = scalar_lea.sflag [#allocation5], %s534
        %s536 = sand.u32 %s269, 1
        %s537 = smul.addr %s536, 32
        %s538 = scalar_lea.vmem [#allocation12], %s537
        %p539 = scmp.lt.s32.totalorder %s36, 1
        %s540 = scalar_select %p539, %s36, 1
        %p541 = scmp.lt.s32.totalorder %s36, 1
        %s542 = scalar_select %p541, %s36, 1
        %p543 = scmp.lt.s32.totalorder %s36, 1
        %s544 = scalar_select %p543, %s36, 1
        %s545 = smul.u32 4, %s544
        %p546 = scmp.lt.s32.totalorder %s36, 1
        %s547 = scalar_select %p546, %s36, 1
        %s548 = smul.u32 4, %s547
        %p549 = scmp.lt.s32.totalorder %s548, 7
        %s550 = scalar_select %p549, %s548, 7
        %s551 = scalar_lea.vmem %s5, %s550
        %p552 = scmp.lt.s32.totalorder %s36, 1
        %s553 = scalar_select %p552, %s36, 1
        %s554 = smul.u32 4, %s553
        %p555 = scmp.lt.s32.totalorder %s36, 1
        %s556 = scalar_select %p555, %s36, 1
        %s557 = smul.u32 64, %s556
        %p558 = scmp.eq.s32.totalorder %s36, 0
        // Predicated region
        $region73: #{tpu_custom_call.1} parent=51 // pred_check
          %p559 = pneg %p558
        $region74: #{tpu_custom_call.1} parent=51 // pred_check_branch
          %561 = sbr.rel (%p559) target = $region76
        $region75: #{tpu_custom_call.1} parent=51 // pred_region
          %562 = vst [vmem:[#allocation2] sm:$0xff] 0.0
          %563 = vst [vmem:[#allocation2 + $0x8] sm:$0xff] 0.0
          %564 = vst [vmem:[#allocation2 + $0x10] sm:$0xff] 0.0
          %565 = vst [vmem:[#allocation2 + $0x18] sm:$0xff] 0.0
        $region76: #{tpu_custom_call.1} parent=51 // pred_fallthru
          _
        %v566 = vld [vmem:[%s444] sm:$0xff]
        %v567 = vld [vmem:[%s444 + $0x8] sm:$0xff]
        %v568 = vld [vmem:[%s444 + $0x10] sm:$0xff]
        %v569 = vld [vmem:[%s444 + $0x18] sm:$0xff]
        %p570 = scmp.lt.s32.totalorder %s36, 2
        // Predicated region
        $region77: #{tpu_custom_call.1} parent=51 // pred_check
          %p571 = pneg %p570
        $region78: #{tpu_custom_call.1} parent=51 // pred_check_branch
          %573 = sbr.rel (%p571) target = $region80
        $region79: #{tpu_custom_call.1} parent=51 // pred_region
          %v574 = vld [vmem:[%s453] sm:$0xff]
          %v575 = vld [vmem:[%s453 + $0x8] sm:$0xff]
          %v576 = vld [vmem:[%s453 + $0x10] sm:$0xff]
          %v577 = vld [vmem:[%s453 + $0x18] sm:$0xff]
          %v578 = vld [vmem:[%s453 + $0x20] sm:$0xff]
          %v579 = vld [vmem:[%s453 + $0x28] sm:$0xff]
          %v580 = vld [vmem:[%s453 + $0x30] sm:$0xff]
          %v581 = vld [vmem:[%s453 + $0x38] sm:$0xff]
          %v582 = vld [vmem:[%s453 + $0x40] sm:$0xff]
          %v583 = vld [vmem:[%s453 + $0x48] sm:$0xff]
          %v584 = vld [vmem:[%s453 + $0x50] sm:$0xff]
          %v585 = vld [vmem:[%s453 + $0x58] sm:$0xff]
          %v586 = vld [vmem:[%s453 + $0x60] sm:$0xff]
          %v587 = vld [vmem:[%s453 + $0x68] sm:$0xff]
          %v588 = vld [vmem:[%s453 + $0x70] sm:$0xff]
          %v589 = vld [vmem:[%s453 + $0x78] sm:$0xff]
          %v590 = vld [vmem:[%s453 + $0x80] sm:$0xff]
          %v591 = vld [vmem:[%s453 + $0x88] sm:$0xff]
          %v592 = vld [vmem:[%s453 + $0x90] sm:$0xff]
          %v593 = vld [vmem:[%s453 + $0x98] sm:$0xff]
          %v594 = vld [vmem:[%s453 + $0xa0] sm:$0xff]
          %v595 = vld [vmem:[%s453 + $0xa8] sm:$0xff]
          %v596 = vld [vmem:[%s453 + $0xb0] sm:$0xff]
          %v597 = vld [vmem:[%s453 + $0xb8] sm:$0xff]
          %v598 = vld [vmem:[%s453 + $0xc0] sm:$0xff]
          %v599 = vld [vmem:[%s453 + $0xc8] sm:$0xff]
          %v600 = vld [vmem:[%s453 + $0xd0] sm:$0xff]
          %v601 = vld [vmem:[%s453 + $0xd8] sm:$0xff]
          %v602 = vld [vmem:[%s453 + $0xe0] sm:$0xff]
          %v603 = vld [vmem:[%s453 + $0xe8] sm:$0xff]
          %v604 = vld [vmem:[%s453 + $0xf0] sm:$0xff]
          %v605 = vld [vmem:[%s453 + $0xf8] sm:$0xff]
          %v606 = vld [vmem:[%s453 + $0x100] sm:$0xff]
          %v607 = vld [vmem:[%s453 + $0x108] sm:$0xff]
          %v608 = vld [vmem:[%s453 + $0x110] sm:$0xff]
          %v609 = vld [vmem:[%s453 + $0x118] sm:$0xff]
          %v610 = vld [vmem:[%s453 + $0x120] sm:$0xff]
          %v611 = vld [vmem:[%s453 + $0x128] sm:$0xff]
          %v612 = vld [vmem:[%s453 + $0x130] sm:$0xff]
          %v613 = vld [vmem:[%s453 + $0x138] sm:$0xff]
          %v614 = vld [vmem:[%s453 + $0x140] sm:$0xff]
          %v615 = vld [vmem:[%s453 + $0x148] sm:$0xff]
          %v616 = vld [vmem:[%s453 + $0x150] sm:$0xff]
          %v617 = vld [vmem:[%s453 + $0x158] sm:$0xff]
          %v618 = vld [vmem:[%s453 + $0x160] sm:$0xff]
          %v619 = vld [vmem:[%s453 + $0x168] sm:$0xff]
          %v620 = vld [vmem:[%s453 + $0x170] sm:$0xff]
          %v621 = vld [vmem:[%s453 + $0x178] sm:$0xff]
          %v622 = vld [vmem:[%s453 + $0x180] sm:$0xff]
          %v623 = vld [vmem:[%s453 + $0x188] sm:$0xff]
          %v624 = vld [vmem:[%s453 + $0x190] sm:$0xff]
          %v625 = vld [vmem:[%s453 + $0x198] sm:$0xff]
          %v626 = vld [vmem:[%s453 + $0x1a0] sm:$0xff]
          %v627 = vld [vmem:[%s453 + $0x1a8] sm:$0xff]
          %v628 = vld [vmem:[%s453 + $0x1b0] sm:$0xff]
          %v629 = vld [vmem:[%s453 + $0x1b8] sm:$0xff]
          %v630 = vld [vmem:[%s453 + $0x1c0] sm:$0xff]
          %v631 = vld [vmem:[%s453 + $0x1c8] sm:$0xff]
          %v632 = vld [vmem:[%s453 + $0x1d0] sm:$0xff]
          %v633 = vld [vmem:[%s453 + $0x1d8] sm:$0xff]
          %v634 = vld [vmem:[%s453 + $0x1e0] sm:$0xff]
          %v635 = vld [vmem:[%s453 + $0x1e8] sm:$0xff]
          %v636 = vld [vmem:[%s453 + $0x1f0] sm:$0xff]
          %v637 = vld [vmem:[%s453 + $0x1f8] sm:$0xff]
          %v638 = vld [vmem:[%s453 + $0x200] sm:$0xff]
          %v639 = vld [vmem:[%s453 + $0x208] sm:$0xff]
          %v640 = vld [vmem:[%s453 + $0x210] sm:$0xff]
          %v641 = vld [vmem:[%s453 + $0x218] sm:$0xff]
          %v642 = vld [vmem:[%s453 + $0x220] sm:$0xff]
          %v643 = vld [vmem:[%s453 + $0x228] sm:$0xff]
          %v644 = vld [vmem:[%s453 + $0x230] sm:$0xff]
          %v645 = vld [vmem:[%s453 + $0x238] sm:$0xff]
          %v646 = vld [vmem:[%s453 + $0x240] sm:$0xff]
          %v647 = vld [vmem:[%s453 + $0x248] sm:$0xff]
          %v648 = vld [vmem:[%s453 + $0x250] sm:$0xff]
          %v649 = vld [vmem:[%s453 + $0x258] sm:$0xff]
          %v650 = vld [vmem:[%s453 + $0x260] sm:$0xff]
          %v651 = vld [vmem:[%s453 + $0x268] sm:$0xff]
          %v652 = vld [vmem:[%s453 + $0x270] sm:$0xff]
          %v653 = vld [vmem:[%s453 + $0x278] sm:$0xff]
          %v654 = vld [vmem:[%s453 + $0x280] sm:$0xff]
          %v655 = vld [vmem:[%s453 + $0x288] sm:$0xff]
          %v656 = vld [vmem:[%s453 + $0x290] sm:$0xff]
          %v657 = vld [vmem:[%s453 + $0x298] sm:$0xff]
          %v658 = vld [vmem:[%s453 + $0x2a0] sm:$0xff]
          %v659 = vld [vmem:[%s453 + $0x2a8] sm:$0xff]
          %v660 = vld [vmem:[%s453 + $0x2b0] sm:$0xff]
          %v661 = vld [vmem:[%s453 + $0x2b8] sm:$0xff]
          %v662 = vld [vmem:[%s453 + $0x2c0] sm:$0xff]
          %v663 = vld [vmem:[%s453 + $0x2c8] sm:$0xff]
          %v664 = vld [vmem:[%s453 + $0x2d0] sm:$0xff]
          %v665 = vld [vmem:[%s453 + $0x2d8] sm:$0xff]
          %v666 = vld [vmem:[%s453 + $0x2e0] sm:$0xff]
          %v667 = vld [vmem:[%s453 + $0x2e8] sm:$0xff]
          %v668 = vld [vmem:[%s453 + $0x2f0] sm:$0xff]
          %v669 = vld [vmem:[%s453 + $0x2f8] sm:$0xff]
          %670 = vmatprep.subr.mxu0 %v575
          %671 = vmatpush1.msra.mxu0 %v574
          %672 = vmatprep.subr.mxu0 %v578
          %673 = vmatpush1.msra.mxu0 %v577
          %674 = vmatprep.subr.mxu0 %v581
          %675 = vmatpush1.msra.mxu0 %v580
          %676 = vmatprep.subr.mxu0 %v584
          %677 = vmatpush1.msra.mxu0 %v583
          %678 = vmatprep.subr.mxu0 %v587
          %679 = vmatpush1.msra.mxu0 %v586
          %680 = vmatprep.subr.mxu0 %v590
          %681 = vmatpush1.msra.mxu0 %v589
          %682 = vmatprep.subr.mxu0 %v593
          %683 = vmatpush1.msra.mxu0 %v592
          %684 = vmatprep.subr.mxu0 %v596
          %685 = vmatpush1.msra.mxu0 %v595
          %686 = vmatprep.subr.mxu0 %v599
          %687 = vmatpush1.msra.mxu0 %v598
          %688 = vmatprep.subr.mxu0 %v602
          %689 = vmatpush1.msra.mxu0 %v601
          %690 = vmatprep.subr.mxu0 %v605
          %691 = vmatpush1.msra.mxu0 %v604
          %692 = vmatprep.subr.mxu0 %v608
          %693 = vmatpush1.msra.mxu0 %v607
          %694 = vmatprep.subr.mxu0 %v611
          %695 = vmatpush1.msra.mxu0 %v610
          %696 = vmatprep.subr.mxu0 %v614
          %697 = vmatpush1.msra.mxu0 %v613
          %698 = vmatprep.subr.mxu0 %v617
          %699 = vmatpush1.msra.mxu0 %v616
          %700 = vmatprep.subr.mxu0 %v620
          %701 = vmatpush1.msra.mxu0 %v619
          %702 = vmatprep.subr.mxu0 %v623
          %703 = vmatpush1.msra.mxu0 %v622
          %704 = vmatprep.subr.mxu0 %v626
          %705 = vmatpush1.msra.mxu0 %v625
          %706 = vmatprep.subr.mxu0 %v629
          %707 = vmatpush1.msra.mxu0 %v628
          %708 = vmatprep.subr.mxu0 %v632
          %709 = vmatpush1.msra.mxu0 %v631
          %710 = vmatprep.subr.mxu0 %v635
          %711 = vmatpush1.msra.mxu0 %v634
          %712 = vmatprep.subr.mxu0 %v638
          %713 = vmatpush1.msra.mxu0 %v637
          %714 = vmatprep.subr.mxu0 %v641
          %715 = vmatpush1.msra.mxu0 %v640
          %716 = vmatprep.subr.mxu0 %v644
          %717 = vmatpush1.msra.mxu0 %v643
          %718 = vmatprep.subr.mxu0 %v647
          %719 = vmatpush1.msra.mxu0 %v646
          %720 = vmatprep.subr.mxu0 %v650
          %721 = vmatpush1.msra.mxu0 %v649
          %722 = vmatprep.subr.mxu0 %v653
          %723 = vmatpush1.msra.mxu0 %v652
          %724 = vmatprep.subr.mxu0 %v656
          %725 = vmatpush1.msra.mxu0 %v655
          %726 = vmatprep.subr.mxu0 %v659
          %727 = vmatpush1.msra.mxu0 %v658
          %728 = vmatprep.subr.mxu0 %v662
          %729 = vmatpush1.msra.mxu0 %v661
          %730 = vmatprep.subr.mxu0 %v665
          %731 = vmatpush1.msra.mxu0 %v664
          %732 = vmatprep.subr.mxu0 %v668
          %733 = vmatpush1.msra.mxu0 %v667
          %734 = vmatprep.mubr.f32.mxu0 %v567
          %735 = vmatmul.mubr.f32.gmra.mrb[0].mxu0 %v566
          %v736 = vpop.f32.mrb[0].mxu0
          %v737 = vadd.f32 0.0, %v736
          %v738 = vpop.f32.mrb[0].mxu0
          %v739 = vadd.f32 0.0, %v738
          %740 = vmatprep.mubr.f32.mxu0 %v569
          %741 = vmatmul.mubr.f32.gmra.mrb[0].mxu0 %v568
          %v742 = vpop.f32.mrb[0].mxu0
          %v743 = vadd.f32 0.0, %v742
          %v744 = vpop.f32.mrb[0].mxu0
          %v745 = vadd.f32 0.0, %v744
          %746 = vdwg.mxu0
          %747 = vmatprep.subr.mxu0 0.0
          %748 = vmatpush1.msra.mxu0 %v576
          %749 = vmatprep.subr.mxu0 0.0
          %750 = vmatpush1.msra.mxu0 %v579
          %751 = vmatprep.subr.mxu0 0.0
          %752 = vmatpush1.msra.mxu0 %v582
          %753 = vmatprep.subr.mxu0 0.0
          %754 = vmatpush1.msra.mxu0 %v585
          %755 = vmatprep.subr.mxu0 0.0
          %756 = vmatpush1.msra.mxu0 %v588
          %757 = vmatprep.subr.mxu0 0.0
          %758 = vmatpush1.msra.mxu0 %v591
          %759 = vmatprep.subr.mxu0 0.0
          %760 = vmatpush1.msra.mxu0 %v594
          %761 = vmatprep.subr.mxu0 0.0
          %762 = vmatpush1.msra.mxu0 %v597
          %763 = vmatprep.subr.mxu0 0.0
          %764 = vmatpush1.msra.mxu0 %v600
          %765 = vmatprep.subr.mxu0 0.0
          %766 = vmatpush1.msra.mxu0 %v603
          %767 = vmatprep.subr.mxu0 0.0
          %768 = vmatpush1.msra.mxu0 %v606
          %769 = vmatprep.subr.mxu0 0.0
          %770 = vmatpush1.msra.mxu0 %v609
          %771 = vmatprep.subr.mxu0 0.0
          %772 = vmatpush1.msra.mxu0 %v612
          %773 = vmatprep.subr.mxu0 0.0
          %774 = vmatpush1.msra.mxu0 %v615
          %775 = vmatprep.subr.mxu0 0.0
          %776 = vmatpush1.msra.mxu0 %v618
          %777 = vmatprep.subr.mxu0 0.0
          %778 = vmatpush1.msra.mxu0 %v621
          %779 = vmatprep.subr.mxu0 0.0
          %780 = vmatpush1.msra.mxu0 %v624
          %781 = vmatprep.subr.mxu0 0.0
          %782 = vmatpush1.msra.mxu0 %v627
          %783 = vmatprep.subr.mxu0 0.0
          %784 = vmatpush1.msra.mxu0 %v630
          %785 = vmatprep.subr.mxu0 0.0
          %786 = vmatpush1.msra.mxu0 %v633
          %787 = vmatprep.subr.mxu0 0.0
          %788 = vmatpush1.msra.mxu0 %v636
          %789 = vmatprep.subr.mxu0 0.0
          %790 = vmatpush1.msra.mxu0 %v639
          %791 = vmatprep.subr.mxu0 0.0
          %792 = vmatpush1.msra.mxu0 %v642
          %793 = vmatprep.subr.mxu0 0.0
          %794 = vmatpush1.msra.mxu0 %v645
          %795 = vmatprep.subr.mxu0 0.0
          %796 = vmatpush1.msra.mxu0 %v648
          %797 = vmatprep.subr.mxu0 0.0
          %798 = vmatpush1.msra.mxu0 %v651
          %799 = vmatprep.subr.mxu0 0.0
          %800 = vmatpush1.msra.mxu0 %v654
          %801 = vmatprep.subr.mxu0 0.0
          %802 = vmatpush1.msra.mxu0 %v657
          %803 = vmatprep.subr.mxu0 0.0
          %804 = vmatpush1.msra.mxu0 %v660
          %805 = vmatprep.subr.mxu0 0.0
          %806 = vmatpush1.msra.mxu0 %v663
          %807 = vmatprep.subr.mxu0 0.0
          %808 = vmatpush1.msra.mxu0 %v666
          %809 = vmatprep.subr.mxu0 0.0
          %810 = vmatpush1.msra.mxu0 %v669
          %811 = vmatprep.mubr.f32.mxu0 %v567
          %812 = vmatmul.mubr.f32.gmra.mrb[0].mxu0 %v566
          %v813 = vpop.f32.mrb[0].mxu0
          %v814 = vadd.f32 0.0, %v813
          %v815 = vpop.f32.mrb[0].mxu0
          %816 = vmatprep.mubr.f32.mxu0 %v569
          %817 = vmatmul.mubr.f32.gmra.mrb[0].mxu0 %v568
          %v818 = vpop.f32.mrb[0].mxu0
          %v819 = vadd.f32 0.0, %v818
          %v820 = vpop.f32.mrb[0].mxu0
          %821 = vdwg.mxu0
          %822 = vadd.xlane.f32.xlu0 %v737
          %v823 = vpop.xlane.xlu0 %822
          %824 = vadd.xlane.f32.xlu0 %v743
          %v825 = vpop.xlane.xlu0 %824
          %v826 = vrcp.pop 128.0
          %v827 = vmul.f32 %v823, %v826
          %v828 = vmul.f32 %v825, %v826
          %v829 = vsub.f32 %v737, %v827
          %v830 = vsub.f32 %v743, %v828
          %v831 = vmul.f32 %v829, %v829
          %v832 = vmul.f32 %v830, %v830
          %833 = vadd.xlane.f32.xlu0 %v831
          %v834 = vpop.xlane.xlu0 %833
          %835 = vadd.xlane.f32.xlu0 %v832
          %v836 = vpop.xlane.xlu0 %835
          %v837 = vmul.f32 %v834, %v826
          %v838 = vmul.f32 %v836, %v826
          %v839 = vadd.f32 %v837, 1e-05
          %v840 = vadd.f32 %v838, 1e-05
          %v841 = vrsqrt.pop %v839
          %v842 = vrsqrt.pop %v840
          %v843 = vmul.f32 %v829, %v841
          %v844 = vmul.f32 %v830, %v842
          %845 = vadd.xlane.f32.xlu0 %v739
          %v846 = vpop.xlane.xlu0 %845
          %847 = vadd.xlane.f32.xlu0 %v745
          %v848 = vpop.xlane.xlu0 %847
          %v849 = vmul.f32 %v846, %v826
          %v850 = vmul.f32 %v848, %v826
          %v851 = vsub.f32 %v739, %v849
          %v852 = vsub.f32 %v745, %v850
          %v853 = vmul.f32 %v851, %v851
          %v854 = vmul.f32 %v852, %v852
          %855 = vadd.xlane.f32.xlu0 %v853
          %v856 = vpop.xlane.xlu0 %855
          %857 = vadd.xlane.f32.xlu0 %v854
          %v858 = vpop.xlane.xlu0 %857
          %v859 = vmul.f32 %v856, %v826
          %v860 = vmul.f32 %v858, %v826
          %v861 = vadd.f32 %v859, 1e-05
          %v862 = vadd.f32 %v860, 1e-05
          %v863 = vrsqrt.pop %v861
          %v864 = vrsqrt.pop %v862
          %v865 = vmul.f32 %v851, %v863
          %v866 = vmul.f32 %v852, %v864
          %867 = vmatprep.subr.mxu0 0.0
          %868 = vmatpush1.xpose.msra.mxu0 %v865
          %869 = vmatprep.subr.mxu0 0.0
          %870 = vmatpush1.xpose.msra.mxu0 %v866
          %871 = vmatprep.subr.mxu0 0.0
          %872 = vmatpush1.xpose.msra.mxu0 0.0
          %873 = vmatprep.subr.mxu0 0.0
          %874 = vmatpush1.xpose.msra.mxu0 0.0
          %875 = vmatprep.subr.mxu0 0.0
          %876 = vmatpush1.xpose.msra.mxu0 0.0
          %877 = vmatprep.subr.mxu0 0.0
          %878 = vmatpush1.xpose.msra.mxu0 0.0
          %879 = vmatprep.subr.mxu0 0.0
          %880 = vmatpush1.xpose.msra.mxu0 0.0
          %881 = vmatprep.subr.mxu0 0.0
          %882 = vmatpush1.xpose.msra.mxu0 0.0
          %883 = vmatprep.subr.mxu0 0.0
          %884 = vmatpush1.xpose.msra.mxu0 0.0
          %885 = vmatprep.subr.mxu0 0.0
          %886 = vmatpush1.xpose.msra.mxu0 0.0
          %887 = vmatprep.subr.mxu0 0.0
          %888 = vmatpush1.xpose.msra.mxu0 0.0
          %889 = vmatprep.subr.mxu0 0.0
          %890 = vmatpush1.xpose.msra.mxu0 0.0
          %891 = vmatprep.subr.mxu0 0.0
          %892 = vmatpush1.xpose.msra.mxu0 0.0
          %893 = vmatprep.subr.mxu0 0.0
          %894 = vmatpush1.xpose.msra.mxu0 0.0
          %895 = vmatprep.subr.mxu0 0.0
          %896 = vmatpush1.xpose.msra.mxu0 0.0
          %897 = vmatprep.subr.mxu0 0.0
          %898 = vmatpush1.xpose.msra.mxu0 0.0
          %899 = vmatprep.subr.mxu0 0.0
          %900 = vmatpush1.xpose.msra.mxu0 0.0
          %901 = vmatprep.subr.mxu0 0.0
          %902 = vmatpush1.xpose.msra.mxu0 0.0
          %903 = vmatprep.subr.mxu0 0.0
          %904 = vmatpush1.xpose.msra.mxu0 0.0
          %905 = vmatprep.subr.mxu0 0.0
          %906 = vmatpush1.xpose.msra.mxu0 0.0
          %907 = vmatprep.subr.mxu0 0.0
          %908 = vmatpush1.xpose.msra.mxu0 0.0
          %909 = vmatprep.subr.mxu0 0.0
          %910 = vmatpush1.xpose.msra.mxu0 0.0
          %911 = vmatprep.subr.mxu0 0.0
          %912 = vmatpush1.xpose.msra.mxu0 0.0
          %913 = vmatprep.subr.mxu0 0.0
          %914 = vmatpush1.xpose.msra.mxu0 0.0
          %915 = vmatprep.subr.mxu0 0.0
          %916 = vmatpush1.xpose.msra.mxu0 0.0
          %917 = vmatprep.subr.mxu0 0.0
          %918 = vmatpush1.xpose.msra.mxu0 0.0
          %919 = vmatprep.subr.mxu0 0.0
          %920 = vmatpush1.xpose.msra.mxu0 0.0
          %921 = vmatprep.subr.mxu0 0.0
          %922 = vmatpush1.xpose.msra.mxu0 0.0
          %923 = vmatprep.subr.mxu0 0.0
          %924 = vmatpush1.xpose.msra.mxu0 0.0
          %925 = vmatprep.subr.mxu0 0.0
          %926 = vmatpush1.xpose.msra.mxu0 0.0
          %927 = vmatprep.subr.mxu0 0.0
          %928 = vmatpush1.xpose.msra.mxu0 0.0
          %929 = vmatprep.subr.mxu0 0.0
          %930 = vmatpush1.xpose.msra.mxu0 0.0
          %931 = vmatprep.mubr.f32.mxu0 0.0
          %932 = vmatmul.mubr.f32.gmra.mrb[0].mxu0 %v843
          %v933 = vpop.f32.mrb[0].mxu0
          %v934 = vadd.f32 0.0, %v933
          %v935 = vpop.f32.mrb[0].mxu0
          %936 = vmatprep.mubr.f32.mxu0 0.0
          %937 = vmatmul.mubr.f32.gmra.mrb[0].mxu0 %v844
          %v938 = vpop.f32.mrb[0].mxu0
          %v939 = vadd.f32 0.0, %v938
          %v940 = vpop.f32.mrb[0].mxu0
          %941 = vdwg.mxu0
          %v942 = vmul.f32 %v934, 0.0625
          %v943 = vmul.f32 %v939, 0.0625
          %vm944 = vcmask 130048
          %v945 = vsel %vm944, %v942, -inf
          %946 = vmax.xlane.f32.xlu0 %v945
          %v947 = vpop.xlane.xlu0 %946
          %v948 = vsel %vm944, %v943, -inf
          %949 = vmax.xlane.f32.xlu0 %v948
          %v950 = vpop.xlane.xlu0 %949
          %v951 = vsub.f32 %v942, %v947
          %v952 = vsub.f32 %v943, %v950
          %v953 = vmul.f32 %v951, 1.442695
          %v954 = vpow.pop %v953
          %v955 = vmul.f32 %v952, 1.442695
          %v956 = vpow.pop %v955
          %v957 = vsel %vm944, %v954, 0.0
          %958 = vadd.xlane.f32.xlu0 %v957
          %v959 = vpop.xlane.xlu0 %958
          %v960 = vsel %vm944, %v956, 0.0
          %961 = vadd.xlane.f32.xlu0 %v960
          %v962 = vpop.xlane.xlu0 %961
          %v963 = vrcp.pop %v959
          %v964 = vmul.f32 %v954, %v963
          %v965 = vrcp.pop %v962
          %v966 = vmul.f32 %v956, %v965
          %v968 = vsel %vm944, %v964, 0
          %v971 = vsel %vm944, %v966, 0
          %973 = vmatprep.subr.mxu0 0.0
          %974 = vmatpush1.msra.mxu0 %v814
          %975 = vmatprep.subr.mxu0 0.0
          %976 = vmatpush1.msra.mxu0 %v819
          %977 = vmatprep.subr.mxu0 0.0
          %978 = vmatpush1.msra.mxu0 0.0
          %979 = vmatprep.subr.mxu0 0.0
          %980 = vmatpush1.msra.mxu0 0.0
          %981 = vmatprep.subr.mxu0 0.0
          %982 = vmatpush1.msra.mxu0 0.0
          %983 = vmatprep.subr.mxu0 0.0
          %984 = vmatpush1.msra.mxu0 0.0
          %985 = vmatprep.subr.mxu0 0.0
          %986 = vmatpush1.msra.mxu0 0.0
          %987 = vmatprep.subr.mxu0 0.0
          %988 = vmatpush1.msra.mxu0 0.0
          %989 = vmatprep.subr.mxu0 0.0
          %990 = vmatpush1.msra.mxu0 0.0
          %991 = vmatprep.subr.mxu0 0.0
          %992 = vmatpush1.msra.mxu0 0.0
          %993 = vmatprep.subr.mxu0 0.0
          %994 = vmatpush1.msra.mxu0 0.0
          %995 = vmatprep.subr.mxu0 0.0
          %996 = vmatpush1.msra.mxu0 0.0
          %997 = vmatprep.subr.mxu0 0.0
          %998 = vmatpush1.msra.mxu0 0.0
          %999 = vmatprep.subr.mxu0 0.0
          %1000 = vmatpush1.msra.mxu0 0.0
          %1001 = vmatprep.subr.mxu0 0.0
          %1002 = vmatpush1.msra.mxu0 0.0
          %1003 = vmatprep.subr.mxu0 0.0
          %1004 = vmatpush1.msra.mxu0 0.0
          %1005 = vmatprep.subr.mxu0 0.0
          %1006 = vmatpush1.msra.mxu0 0.0
          %1007 = vmatprep.subr.mxu0 0.0
          %1008 = vmatpush1.msra.mxu0 0.0
          %1009 = vmatprep.subr.mxu0 0.0
          %1010 = vmatpush1.msra.mxu0 0.0
          %1011 = vmatprep.subr.mxu0 0.0
          %1012 = vmatpush1.msra.mxu0 0.0
          %1013 = vmatprep.subr.mxu0 0.0
          %1014 = vmatpush1.msra.mxu0 0.0
          %1015 = vmatprep.subr.mxu0 0.0
          %1016 = vmatpush1.msra.mxu0 0.0
          %1017 = vmatprep.subr.mxu0 0.0
          %1018 = vmatpush1.msra.mxu0 0.0
          %1019 = vmatprep.subr.mxu0 0.0
          %1020 = vmatpush1.msra.mxu0 0.0
          %1021 = vmatprep.subr.mxu0 0.0
          %1022 = vmatpush1.msra.mxu0 0.0
          %1023 = vmatprep.subr.mxu0 0.0
          %1024 = vmatpush1.msra.mxu0 0.0
          %1025 = vmatprep.subr.mxu0 0.0
          %1026 = vmatpush1.msra.mxu0 0.0
          %1027 = vmatprep.subr.mxu0 0.0
          %1028 = vmatpush1.msra.mxu0 0.0
          %1029 = vmatprep.subr.mxu0 0.0
          %1030 = vmatpush1.msra.mxu0 0.0
          %1031 = vmatprep.subr.mxu0 0.0
          %1032 = vmatpush1.msra.mxu0 0.0
          %1033 = vmatprep.subr.mxu0 0.0
          %1034 = vmatpush1.msra.mxu0 0.0
          %1035 = vmatprep.subr.mxu0 0.0
          %1036 = vmatpush1.msra.mxu0 0.0
          %1037 = vmatprep.mubr.f32.mxu0 0.0
          %1038 = vmatmul.mubr.f32.gmra.mrb[0].mxu0 %v968
          %v1039 = vpop.f32.mrb[0].mxu0
          %v1040 = vadd.f32 0.0, %v1039
          %v1041 = vpop.f32.mrb[0].mxu0
          %1042 = vmatprep.mubr.f32.mxu0 0.0
          %1043 = vmatmul.mubr.f32.gmra.mrb[0].mxu0 %v971
          %v1044 = vpop.f32.mrb[0].mxu0
          %v1045 = vadd.f32 0.0, %v1044
          %v1046 = vpop.f32.mrb[0].mxu0
          %1047 = vdwg.mxu0
          %v1048 = vld [vmem:[#allocation2] sm:$0xff]
          %v1049 = vld [vmem:[#allocation2 + $0x8] sm:$0xff]
          %v1050 = vld [vmem:[#allocation2 + $0x10] sm:$0xff]
          %v1051 = vld [vmem:[#allocation2 + $0x18] sm:$0xff]
          %v1052 = vld [vmem:[%s462] sm:$0xff]
          %v1053 = vld [vmem:[%s462 + $0x8] sm:$0xff]
          %v1054 = vld [vmem:[%s462 + $0x10] sm:$0xff]
          %v1055 = vld [vmem:[%s462 + $0x18] sm:$0xff]
          %v1056 = vld [vmem:[%s462 + $0x20] sm:$0xff]
          %v1057 = vld [vmem:[%s462 + $0x28] sm:$0xff]
          %v1058 = vld [vmem:[%s462 + $0x30] sm:$0xff]
          %v1059 = vld [vmem:[%s462 + $0x38] sm:$0xff]
          %v1060 = vld [vmem:[%s462 + $0x40] sm:$0xff]
          %v1061 = vld [vmem:[%s462 + $0x48] sm:$0xff]
          %v1062 = vld [vmem:[%s462 + $0x50] sm:$0xff]
          %v1063 = vld [vmem:[%s462 + $0x58] sm:$0xff]
          %v1064 = vld [vmem:[%s462 + $0x60] sm:$0xff]
          %v1065 = vld [vmem:[%s462 + $0x68] sm:$0xff]
          %v1066 = vld [vmem:[%s462 + $0x70] sm:$0xff]
          %v1067 = vld [vmem:[%s462 + $0x78] sm:$0xff]
          %v1068 = vld [vmem:[%s462 + $0x80] sm:$0xff]
          %v1069 = vld [vmem:[%s462 + $0x88] sm:$0xff]
          %v1070 = vld [vmem:[%s462 + $0x90] sm:$0xff]
          %v1071 = vld [vmem:[%s462 + $0x98] sm:$0xff]
          %v1072 = vld [vmem:[%s462 + $0xa0] sm:$0xff]
          %v1073 = vld [vmem:[%s462 + $0xa8] sm:$0xff]
          %v1074 = vld [vmem:[%s462 + $0xb0] sm:$0xff]
          %v1075 = vld [vmem:[%s462 + $0xb8] sm:$0xff]
          %v1076 = vld [vmem:[%s462 + $0xc0] sm:$0xff]
          %v1077 = vld [vmem:[%s462 + $0xc8] sm:$0xff]
          %v1078 = vld [vmem:[%s462 + $0xd0] sm:$0xff]
          %v1079 = vld [vmem:[%s462 + $0xd8] sm:$0xff]
          %v1080 = vld [vmem:[%s462 + $0xe0] sm:$0xff]
          %v1081 = vld [vmem:[%s462 + $0xe8] sm:$0xff]
          %v1082 = vld [vmem:[%s462 + $0xf0] sm:$0xff]
          %v1083 = vld [vmem:[%s462 + $0xf8] sm:$0xff]
          %1084 = vmatprep.subr.mxu0 %v1053
          %1085 = vmatpush1.msra.mxu0 %v1052
          %1086 = vmatprep.subr.mxu0 %v1055
          %1087 = vmatpush1.msra.mxu0 %v1054
          %1088 = vmatprep.subr.mxu0 %v1057
          %1089 = vmatpush1.msra.mxu0 %v1056
          %1090 = vmatprep.subr.mxu0 %v1059
          %1091 = vmatpush1.msra.mxu0 %v1058
          %1092 = vmatprep.subr.mxu0 %v1061
          %1093 = vmatpush1.msra.mxu0 %v1060
          %1094 = vmatprep.subr.mxu0 %v1063
          %1095 = vmatpush1.msra.mxu0 %v1062
          %1096 = vmatprep.subr.mxu0 %v1065
          %1097 = vmatpush1.msra.mxu0 %v1064
          %1098 = vmatprep.subr.mxu0 %v1067
          %1099 = vmatpush1.msra.mxu0 %v1066
          %1100 = vmatprep.subr.mxu0 %v1069
          %1101 = vmatpush1.msra.mxu0 %v1068
          %1102 = vmatprep.subr.mxu0 %v1071
          %1103 = vmatpush1.msra.mxu0 %v1070
          %1104 = vmatprep.subr.mxu0 %v1073
          %1105 = vmatpush1.msra.mxu0 %v1072
          %1106 = vmatprep.subr.mxu0 %v1075
          %1107 = vmatpush1.msra.mxu0 %v1074
          %1108 = vmatprep.subr.mxu0 %v1077
          %1109 = vmatpush1.msra.mxu0 %v1076
          %1110 = vmatprep.subr.mxu0 %v1079
          %1111 = vmatpush1.msra.mxu0 %v1078
          %1112 = vmatprep.subr.mxu0 %v1081
          %1113 = vmatpush1.msra.mxu0 %v1080
          %1114 = vmatprep.subr.mxu0 %v1083
          %1115 = vmatpush1.msra.mxu0 %v1082
          %1116 = vmatprep.subr.mxu0 0.0
          %1117 = vmatpush1.msra.mxu0 0.0
          %1118 = vmatprep.subr.mxu0 0.0
          %1119 = vmatpush1.msra.mxu0 0.0
          %1120 = vmatprep.subr.mxu0 0.0
          %1121 = vmatpush1.msra.mxu0 0.0
          %1122 = vmatprep.subr.mxu0 0.0
          %1123 = vmatpush1.msra.mxu0 0.0
          %1124 = vmatprep.subr.mxu0 0.0
          %1125 = vmatpush1.msra.mxu0 0.0
          %1126 = vmatprep.subr.mxu0 0.0
          %1127 = vmatpush1.msra.mxu0 0.0
          %1128 = vmatprep.subr.mxu0 0.0
          %1129 = vmatpush1.msra.mxu0 0.0
          %1130 = vmatprep.subr.mxu0 0.0
          %1131 = vmatpush1.msra.mxu0 0.0
          %1132 = vmatprep.subr.mxu0 0.0
          %1133 = vmatpush1.msra.mxu0 0.0
          %1134 = vmatprep.subr.mxu0 0.0
          %1135 = vmatpush1.msra.mxu0 0.0
          %1136 = vmatprep.subr.mxu0 0.0
          %1137 = vmatpush1.msra.mxu0 0.0
          %1138 = vmatprep.subr.mxu0 0.0
          %1139 = vmatpush1.msra.mxu0 0.0
          %1140 = vmatprep.subr.mxu0 0.0
          %1141 = vmatpush1.msra.mxu0 0.0
          %1142 = vmatprep.subr.mxu0 0.0
          %1143 = vmatpush1.msra.mxu0 0.0
          %1144 = vmatprep.subr.mxu0 0.0
          %1145 = vmatpush1.msra.mxu0 0.0
          %1146 = vmatprep.subr.mxu0 0.0
          %1147 = vmatpush1.msra.mxu0 0.0
          %1148 = vmatprep.mubr.f32.mxu0 0.0
          %1149 = vmatmul.mubr.f32.gmra.mrb[0].mxu0 %v1040
          %v1150 = vpop.f32.mrb[0].mxu0
          %v1151 = vadd.f32 0.0, %v1150
          %v1152 = vpop.f32.mrb[0].mxu0
          %v1153 = vadd.f32 0.0, %v1152
          %1154 = vmatprep.mubr.f32.mxu0 0.0
          %1155 = vmatmul.mubr.f32.gmra.mrb[0].mxu0 %v1045
          %v1156 = vpop.f32.mrb[0].mxu0
          %v1157 = vadd.f32 0.0, %v1156
          %v1158 = vpop.f32.mrb[0].mxu0
          %v1159 = vadd.f32 0.0, %v1158
          %1160 = vdwg.mxu0
          %v1161 = vadd.f32 %v1048, %v1151
          %v1162 = vadd.f32 %v1049, %v1153
          %v1163 = vadd.f32 %v1050, %v1157
          %v1164 = vadd.f32 %v1051, %v1159
          %1165 = vst [vmem:[#allocation2] sm:$0xff] %v1161
          %1166 = vst [vmem:[#allocation2 + $0x8] sm:$0xff] %v1162
          %1167 = vst [vmem:[#allocation2 + $0x10] sm:$0xff] %v1163
          %1168 = vst [vmem:[#allocation2 + $0x18] sm:$0xff] %v1164
          %v1169 = vld [vmem:[%s471] sm:$0xff]
          %v1170 = vld [vmem:[%s471 + $0x8] sm:$0xff]
          %v1171 = vld [vmem:[%s471 + $0x10] sm:$0xff]
          %v1172 = vld [vmem:[%s471 + $0x18] sm:$0xff]
          %v1173 = vld [vmem:[%s471 + $0x20] sm:$0xff]
          %v1174 = vld [vmem:[%s471 + $0x28] sm:$0xff]
          %v1175 = vld [vmem:[%s471 + $0x30] sm:$0xff]
          %v1176 = vld [vmem:[%s471 + $0x38] sm:$0xff]
          %v1177 = vld [vmem:[%s471 + $0x40] sm:$0xff]
          %v1178 = vld [vmem:[%s471 + $0x48] sm:$0xff]
          %v1179 = vld [vmem:[%s471 + $0x50] sm:$0xff]
          %v1180 = vld [vmem:[%s471 + $0x58] sm:$0xff]
          %v1181 = vld [vmem:[%s471 + $0x60] sm:$0xff]
          %v1182 = vld [vmem:[%s471 + $0x68] sm:$0xff]
          %v1183 = vld [vmem:[%s471 + $0x70] sm:$0xff]
          %v1184 = vld [vmem:[%s471 + $0x78] sm:$0xff]
          %v1185 = vld [vmem:[%s471 + $0x80] sm:$0xff]
          %v1186 = vld [vmem:[%s471 + $0x88] sm:$0xff]
          %v1187 = vld [vmem:[%s471 + $0x90] sm:$0xff]
          %v1188 = vld [vmem:[%s471 + $0x98] sm:$0xff]
          %v1189 = vld [vmem:[%s471 + $0xa0] sm:$0xff]
          %v1190 = vld [vmem:[%s471 + $0xa8] sm:$0xff]
          %v1191 = vld [vmem:[%s471 + $0xb0] sm:$0xff]
          %v1192 = vld [vmem:[%s471 + $0xb8] sm:$0xff]
          %v1193 = vld [vmem:[%s471 + $0xc0] sm:$0xff]
          %v1194 = vld [vmem:[%s471 + $0xc8] sm:$0xff]
          %v1195 = vld [vmem:[%s471 + $0xd0] sm:$0xff]
          %v1196 = vld [vmem:[%s471 + $0xd8] sm:$0xff]
          %v1197 = vld [vmem:[%s471 + $0xe0] sm:$0xff]
          %v1198 = vld [vmem:[%s471 + $0xe8] sm:$0xff]
          %v1199 = vld [vmem:[%s471 + $0xf0] sm:$0xff]
          %v1200 = vld [vmem:[%s471 + $0xf8] sm:$0xff]
          %v1201 = vld [vmem:[%s471 + $0x100] sm:$0xff]
          %v1202 = vld [vmem:[%s471 + $0x108] sm:$0xff]
          %v1203 = vld [vmem:[%s471 + $0x110] sm:$0xff]
          %v1204 = vld [vmem:[%s471 + $0x118] sm:$0xff]
          %v1205 = vld [vmem:[%s471 + $0x120] sm:$0xff]
          %v1206 = vld [vmem:[%s471 + $0x128] sm:$0xff]
          %v1207 = vld [vmem:[%s471 + $0x130] sm:$0xff]
          %v1208 = vld [vmem:[%s471 + $0x138] sm:$0xff]
          %v1209 = vld [vmem:[%s471 + $0x140] sm:$0xff]
          %v1210 = vld [vmem:[%s471 + $0x148] sm:$0xff]
          %v1211 = vld [vmem:[%s471 + $0x150] sm:$0xff]
          %v1212 = vld [vmem:[%s471 + $0x158] sm:$0xff]
          %v1213 = vld [vmem:[%s471 + $0x160] sm:$0xff]
          %v1214 = vld [vmem:[%s471 + $0x168] sm:$0xff]
          %v1215 = vld [vmem:[%s471 + $0x170] sm:$0xff]
          %v1216 = vld [vmem:[%s471 + $0x178] sm:$0xff]
          %v1217 = vld [vmem:[%s471 + $0x180] sm:$0xff]
          %v1218 = vld [vmem:[%s471 + $0x188] sm:$0xff]
          %v1219 = vld [vmem:[%s471 + $0x190] sm:$0xff]
          %v1220 = vld [vmem:[%s471 + $0x198] sm:$0xff]
          %v1221 = vld [vmem:[%s471 + $0x1a0] sm:$0xff]
          %v1222 = vld [vmem:[%s471 + $0x1a8] sm:$0xff]
          %v1223 = vld [vmem:[%s471 + $0x1b0] sm:$0xff]
          %v1224 = vld [vmem:[%s471 + $0x1b8] sm:$0xff]
          %v1225 = vld [vmem:[%s471 + $0x1c0] sm:$0xff]
          %v1226 = vld [vmem:[%s471 + $0x1c8] sm:$0xff]
          %v1227 = vld [vmem:[%s471 + $0x1d0] sm:$0xff]
          %v1228 = vld [vmem:[%s471 + $0x1d8] sm:$0xff]
          %v1229 = vld [vmem:[%s471 + $0x1e0] sm:$0xff]
          %v1230 = vld [vmem:[%s471 + $0x1e8] sm:$0xff]
          %v1231 = vld [vmem:[%s471 + $0x1f0] sm:$0xff]
          %v1232 = vld [vmem:[%s471 + $0x1f8] sm:$0xff]
          %v1233 = vld [vmem:[%s471 + $0x200] sm:$0xff]
          %v1234 = vld [vmem:[%s471 + $0x208] sm:$0xff]
          %v1235 = vld [vmem:[%s471 + $0x210] sm:$0xff]
          %v1236 = vld [vmem:[%s471 + $0x218] sm:$0xff]
          %v1237 = vld [vmem:[%s471 + $0x220] sm:$0xff]
          %v1238 = vld [vmem:[%s471 + $0x228] sm:$0xff]
          %v1239 = vld [vmem:[%s471 + $0x230] sm:$0xff]
          %v1240 = vld [vmem:[%s471 + $0x238] sm:$0xff]
          %v1241 = vld [vmem:[%s471 + $0x240] sm:$0xff]
          %v1242 = vld [vmem:[%s471 + $0x248] sm:$0xff]
          %v1243 = vld [vmem:[%s471 + $0x250] sm:$0xff]
          %v1244 = vld [vmem:[%s471 + $0x258] sm:$0xff]
          %v1245 = vld [vmem:[%s471 + $0x260] sm:$0xff]
          %v1246 = vld [vmem:[%s471 + $0x268] sm:$0xff]
          %v1247 = vld [vmem:[%s471 + $0x270] sm:$0xff]
          %v1248 = vld [vmem:[%s471 + $0x278] sm:$0xff]
          %v1249 = vld [vmem:[%s471 + $0x280] sm:$0xff]
          %v1250 = vld [vmem:[%s471 + $0x288] sm:$0xff]
          %v1251 = vld [vmem:[%s471 + $0x290] sm:$0xff]
          %v1252 = vld [vmem:[%s471 + $0x298] sm:$0xff]
          %v1253 = vld [vmem:[%s471 + $0x2a0] sm:$0xff]
          %v1254 = vld [vmem:[%s471 + $0x2a8] sm:$0xff]
          %v1255 = vld [vmem:[%s471 + $0x2b0] sm:$0xff]
          %v1256 = vld [vmem:[%s471 + $0x2b8] sm:$0xff]
          %v1257 = vld [vmem:[%s471 + $0x2c0] sm:$0xff]
          %v1258 = vld [vmem:[%s471 + $0x2c8] sm:$0xff]
          %v1259 = vld [vmem:[%s471 + $0x2d0] sm:$0xff]
          %v1260 = vld [vmem:[%s471 + $0x2d8] sm:$0xff]
          %v1261 = vld [vmem:[%s471 + $0x2e0] sm:$0xff]
          %v1262 = vld [vmem:[%s471 + $0x2e8] sm:$0xff]
          %v1263 = vld [vmem:[%s471 + $0x2f0] sm:$0xff]
          %v1264 = vld [vmem:[%s471 + $0x2f8] sm:$0xff]
          %v1265 = vld [vmem:[%s471 + $0x300] sm:$0xff]
          %v1266 = vld [vmem:[%s471 + $0x308] sm:$0xff]
          %v1267 = vld [vmem:[%s471 + $0x310] sm:$0xff]
          %v1268 = vld [vmem:[%s471 + $0x318] sm:$0xff]
          %v1269 = vld [vmem:[%s471 + $0x320] sm:$0xff]
          %v1270 = vld [vmem:[%s471 + $0x328] sm:$0xff]
          %v1271 = vld [vmem:[%s471 + $0x330] sm:$0xff]
          %v1272 = vld [vmem:[%s471 + $0x338] sm:$0xff]
          %v1273 = vld [vmem:[%s471 + $0x340] sm:$0xff]
          %v1274 = vld [vmem:[%s471 + $0x348] sm:$0xff]
          %v1275 = vld [vmem:[%s471 + $0x350] sm:$0xff]
          %v1276 = vld [vmem:[%s471 + $0x358] sm:$0xff]
          %v1277 = vld [vmem:[%s471 + $0x360] sm:$0xff]
          %v1278 = vld [vmem:[%s471 + $0x368] sm:$0xff]
          %v1279 = vld [vmem:[%s471 + $0x370] sm:$0xff]
          %v1280 = vld [vmem:[%s471 + $0x378] sm:$0xff]
          %v1281 = vld [vmem:[%s471 + $0x380] sm:$0xff]
          %v1282 = vld [vmem:[%s471 + $0x388] sm:$0xff]
          %v1283 = vld [vmem:[%s471 + $0x390] sm:$0xff]
          %v1284 = vld [vmem:[%s471 + $0x398] sm:$0xff]
          %v1285 = vld [vmem:[%s471 + $0x3a0] sm:$0xff]
          %v1286 = vld [vmem:[%s471 + $0x3a8] sm:$0xff]
          %v1287 = vld [vmem:[%s471 + $0x3b0] sm:$0xff]
          %v1288 = vld [vmem:[%s471 + $0x3b8] sm:$0xff]
          %v1289 = vld [vmem:[%s471 + $0x3c0] sm:$0xff]
          %v1290 = vld [vmem:[%s471 + $0x3c8] sm:$0xff]
          %v1291 = vld [vmem:[%s471 + $0x3d0] sm:$0xff]
          %v1292 = vld [vmem:[%s471 + $0x3d8] sm:$0xff]
          %v1293 = vld [vmem:[%s471 + $0x3e0] sm:$0xff]
          %v1294 = vld [vmem:[%s471 + $0x3e8] sm:$0xff]
          %v1295 = vld [vmem:[%s471 + $0x3f0] sm:$0xff]
          %v1296 = vld [vmem:[%s471 + $0x3f8] sm:$0xff]
          %v1297 = vld [vmem:[%s551] sm:$0xf]
          %v1299 = vlaneseq
          %v1300 = vshrl.u32 %v1299, 7
          %v1301 = vsub.s32 0, %v1300
          %v1302 = vrot.slane %v1297, %v1301
          %v1303 = vlaneseq
          %v1304 = vshrl.u32 %v1303, 7
          %v1305 = vsub.s32 1, %v1304
          %v1306 = vrot.slane %v1297, %v1305
          %v1307 = vlaneseq
          %v1308 = vshrl.u32 %v1307, 7
          %v1309 = vsub.s32 2, %v1308
          %v1310 = vrot.slane %v1297, %v1309
          %v1311 = vlaneseq
          %v1312 = vshrl.u32 %v1311, 7
          %v1313 = vsub.s32 3, %v1312
          %v1314 = vrot.slane %v1297, %v1313
          %1319 = vmatprep.subr.mxu0 %v1170
          %1320 = vmatpush1.msra.mxu0 %v1169
          %1321 = vmatprep.subr.mxu0 %v1174
          %1322 = vmatpush1.msra.mxu0 %v1173
          %1323 = vmatprep.subr.mxu0 %v1178
          %1324 = vmatpush1.msra.mxu0 %v1177
          %1325 = vmatprep.subr.mxu0 %v1182
          %1326 = vmatpush1.msra.mxu0 %v1181
          %1327 = vmatprep.subr.mxu0 %v1186
          %1328 = vmatpush1.msra.mxu0 %v1185
          %1329 = vmatprep.subr.mxu0 %v1190
          %1330 = vmatpush1.msra.mxu0 %v1189
          %1331 = vmatprep.subr.mxu0 %v1194
          %1332 = vmatpush1.msra.mxu0 %v1193
          %1333 = vmatprep.subr.mxu0 %v1198
          %1334 = vmatpush1.msra.mxu0 %v1197
          %1335 = vmatprep.subr.mxu0 %v1202
          %1336 = vmatpush1.msra.mxu0 %v1201
          %1337 = vmatprep.subr.mxu0 %v1206
          %1338 = vmatpush1.msra.mxu0 %v1205
          %1339 = vmatprep.subr.mxu0 %v1210
          %1340 = vmatpush1.msra.mxu0 %v1209
          %1341 = vmatprep.subr.mxu0 %v1214
          %1342 = vmatpush1.msra.mxu0 %v1213
          %1343 = vmatprep.subr.mxu0 %v1218
          %1344 = vmatpush1.msra.mxu0 %v1217
          %1345 = vmatprep.subr.mxu0 %v1222
          %1346 = vmatpush1.msra.mxu0 %v1221
          %1347 = vmatprep.subr.mxu0 %v1226
          %1348 = vmatpush1.msra.mxu0 %v1225
          %1349 = vmatprep.subr.mxu0 %v1230
          %1350 = vmatpush1.msra.mxu0 %v1229
          %1351 = vmatprep.subr.mxu0 %v1234
          %1352 = vmatpush1.msra.mxu0 %v1233
          %1353 = vmatprep.subr.mxu0 %v1238
          %1354 = vmatpush1.msra.mxu0 %v1237
          %1355 = vmatprep.subr.mxu0 %v1242
          %1356 = vmatpush1.msra.mxu0 %v1241
          %1357 = vmatprep.subr.mxu0 %v1246
          %1358 = vmatpush1.msra.mxu0 %v1245
          %1359 = vmatprep.subr.mxu0 %v1250
          %1360 = vmatpush1.msra.mxu0 %v1249
          %1361 = vmatprep.subr.mxu0 %v1254
          %1362 = vmatpush1.msra.mxu0 %v1253
          %1363 = vmatprep.subr.mxu0 %v1258
          %1364 = vmatpush1.msra.mxu0 %v1257
          %1365 = vmatprep.subr.mxu0 %v1262
          %1366 = vmatpush1.msra.mxu0 %v1261
          %1367 = vmatprep.subr.mxu0 %v1266
          %1368 = vmatpush1.msra.mxu0 %v1265
          %1369 = vmatprep.subr.mxu0 %v1270
          %1370 = vmatpush1.msra.mxu0 %v1269
          %1371 = vmatprep.subr.mxu0 %v1274
          %1372 = vmatpush1.msra.mxu0 %v1273
          %1373 = vmatprep.subr.mxu0 %v1278
          %1374 = vmatpush1.msra.mxu0 %v1277
          %1375 = vmatprep.subr.mxu0 %v1282
          %1376 = vmatpush1.msra.mxu0 %v1281
          %1377 = vmatprep.subr.mxu0 %v1286
          %1378 = vmatpush1.msra.mxu0 %v1285
          %1379 = vmatprep.subr.mxu0 %v1290
          %1380 = vmatpush1.msra.mxu0 %v1289
          %1381 = vmatprep.subr.mxu0 %v1294
          %1382 = vmatpush1.msra.mxu0 %v1293
          %1383 = vmatprep.mubr.f32.mxu0 %v567
          %1384 = vmatmul.mubr.f32.gmra.mrb[0].mxu0 %v566
          %v1385 = vpop.f32.mrb[0].mxu0
          %v1386 = vadd.f32 %v1302, %v1385
          %v1387 = vpop.f32.mrb[0].mxu0
          %v1388 = vadd.f32 %v1306, %v1387
          %1389 = vmatprep.mubr.f32.mxu0 %v569
          %1390 = vmatmul.mubr.f32.gmra.mrb[0].mxu0 %v568
          %v1391 = vpop.f32.mrb[0].mxu0
          %v1392 = vadd.f32 %v1302, %v1391
          %v1393 = vpop.f32.mrb[0].mxu0
          %v1394 = vadd.f32 %v1306, %v1393
          %1395 = vdwg.mxu0
          %1396 = vmatprep.subr.mxu0 %v1172
          %1397 = vmatpush1.msra.mxu0 %v1171
          %1398 = vmatprep.subr.mxu0 %v1176
          %1399 = vmatpush1.msra.mxu0 %v1175
          %1400 = vmatprep.subr.mxu0 %v1180
          %1401 = vmatpush1.msra.mxu0 %v1179
          %1402 = vmatprep.subr.mxu0 %v1184
          %1403 = vmatpush1.msra.mxu0 %v1183
          %1404 = vmatprep.subr.mxu0 %v1188
          %1405 = vmatpush1.msra.mxu0 %v1187
          %1406 = vmatprep.subr.mxu0 %v1192
          %1407 = vmatpush1.msra.mxu0 %v1191
          %1408 = vmatprep.subr.mxu0 %v1196
          %1409 = vmatpush1.msra.mxu0 %v1195
          %1410 = vmatprep.subr.mxu0 %v1200
          %1411 = vmatpush1.msra.mxu0 %v1199
          %1412 = vmatprep.subr.mxu0 %v1204
          %1413 = vmatpush1.msra.mxu0 %v1203
          %1414 = vmatprep.subr.mxu0 %v1208
          %1415 = vmatpush1.msra.mxu0 %v1207
          %1416 = vmatprep.subr.mxu0 %v1212
          %1417 = vmatpush1.msra.mxu0 %v1211
          %1418 = vmatprep.subr.mxu0 %v1216
          %1419 = vmatpush1.msra.mxu0 %v1215
          %1420 = vmatprep.subr.mxu0 %v1220
          %1421 = vmatpush1.msra.mxu0 %v1219
          %1422 = vmatprep.subr.mxu0 %v1224
          %1423 = vmatpush1.msra.mxu0 %v1223
          %1424 = vmatprep.subr.mxu0 %v1228
          %1425 = vmatpush1.msra.mxu0 %v1227
          %1426 = vmatprep.subr.mxu0 %v1232
          %1427 = vmatpush1.msra.mxu0 %v1231
          %1428 = vmatprep.subr.mxu0 %v1236
          %1429 = vmatpush1.msra.mxu0 %v1235
          %1430 = vmatprep.subr.mxu0 %v1240
          %1431 = vmatpush1.msra.mxu0 %v1239
          %1432 = vmatprep.subr.mxu0 %v1244
          %1433 = vmatpush1.msra.mxu0 %v1243
          %1434 = vmatprep.subr.mxu0 %v1248
          %1435 = vmatpush1.msra.mxu0 %v1247
          %1436 = vmatprep.subr.mxu0 %v1252
          %1437 = vmatpush1.msra.mxu0 %v1251
          %1438 = vmatprep.subr.mxu0 %v1256
          %1439 = vmatpush1.msra.mxu0 %v1255
          %1440 = vmatprep.subr.mxu0 %v1260
          %1441 = vmatpush1.msra.mxu0 %v1259
          %1442 = vmatprep.subr.mxu0 %v1264
          %1443 = vmatpush1.msra.mxu0 %v1263
          %1444 = vmatprep.subr.mxu0 %v1268
          %1445 = vmatpush1.msra.mxu0 %v1267
          %1446 = vmatprep.subr.mxu0 %v1272
          %1447 = vmatpush1.msra.mxu0 %v1271
          %1448 = vmatprep.subr.mxu0 %v1276
          %1449 = vmatpush1.msra.mxu0 %v1275
          %1450 = vmatprep.subr.mxu0 %v1280
          %1451 = vmatpush1.msra.mxu0 %v1279
          %1452 = vmatprep.subr.mxu0 %v1284
          %1453 = vmatpush1.msra.mxu0 %v1283
          %1454 = vmatprep.subr.mxu0 %v1288
          %1455 = vmatpush1.msra.mxu0 %v1287
          %1456 = vmatprep.subr.mxu0 %v1292
          %1457 = vmatpush1.msra.mxu0 %v1291
          %1458 = vmatprep.subr.mxu0 %v1296
          %1459 = vmatpush1.msra.mxu0 %v1295
          %1460 = vmatprep.mubr.f32.mxu0 %v567
          %1461 = vmatmul.mubr.f32.gmra.mrb[0].mxu0 %v566
          %v1462 = vpop.f32.mrb[0].mxu0
          %v1463 = vadd.f32 %v1310, %v1462
          %v1464 = vpop.f32.mrb[0].mxu0
          %v1465 = vadd.f32 %v1314, %v1464
          %1466 = vmatprep.mubr.f32.mxu0 %v569
          %1467 = vmatmul.mubr.f32.gmra.mrb[0].mxu0 %v568
          %v1468 = vpop.f32.mrb[0].mxu0
          %v1469 = vadd.f32 %v1310, %v1468
          %v1470 = vpop.f32.mrb[0].mxu0
          %v1471 = vadd.f32 %v1314, %v1470
          %1472 = vdwg.mxu0
          %v1473 = vmul.f32 %v1386, 0.5
          %v1474 = vmul.f32 %v1388, 0.5
          %v1475 = vmul.f32 %v1463, 0.5
          %v1476 = vmul.f32 %v1465, 0.5
          %v1477 = vmul.f32 %v1392, 0.5
          %v1478 = vmul.f32 %v1394, 0.5
          %v1479 = vmul.f32 %v1469, 0.5
          %v1480 = vmul.f32 %v1471, 0.5
          %v1481 = vmul.f32 %v1386, 0.70710677
          %v1482 = vmul.f32 %v1388, 0.70710677
          %v1483 = vmul.f32 %v1463, 0.70710677
          %v1484 = vmul.f32 %v1465, 0.70710677
          %v1485 = vmul.f32 %v1392, 0.70710677
          %v1486 = vmul.f32 %v1394, 0.70710677
          %v1487 = vmul.f32 %v1469, 0.70710677
          %v1488 = vmul.f32 %v1471, 0.70710677
          %v1489 = vand.u32 2147483647, %v1481
          %v1490 = vand.u32 2147483647, %v1482
          %v1491 = vand.u32 2147483647, %v1483
          %v1492 = vand.u32 2147483647, %v1484
          %v1493 = vand.u32 2147483647, %v1485
          %v1494 = vand.u32 2147483647, %v1486
          %v1495 = vand.u32 2147483647, %v1487
          %v1496 = vand.u32 2147483647, %v1488
          %v1497 = vmul.f32 %v1489, 0.3275911
          %v1498 = vmul.f32 %v1490, 0.3275911
          %v1499 = vmul.f32 %v1491, 0.3275911
          %v1500 = vmul.f32 %v1492, 0.3275911
          %v1501 = vmul.f32 %v1493, 0.3275911
          %v1502 = vmul.f32 %v1494, 0.3275911
          %v1503 = vmul.f32 %v1495, 0.3275911
          %v1504 = vmul.f32 %v1496, 0.3275911
          %v1505 = vadd.f32 %v1497, 1.0
          %v1506 = vadd.f32 %v1498, 1.0
          %v1507 = vadd.f32 %v1499, 1.0
          %v1508 = vadd.f32 %v1500, 1.0
          %v1509 = vadd.f32 %v1501, 1.0
          %v1510 = vadd.f32 %v1502, 1.0
          %v1511 = vadd.f32 %v1503, 1.0
          %v1512 = vadd.f32 %v1504, 1.0
          %v1513 = vrcp.pop %v1505
          %v1514 = vmul.f32 1.0, %v1513
          %v1515 = vrcp.pop %v1506
          %v1516 = vmul.f32 1.0, %v1515
          %v1517 = vrcp.pop %v1507
          %v1518 = vmul.f32 1.0, %v1517
          %v1519 = vrcp.pop %v1508
          %v1520 = vmul.f32 1.0, %v1519
          %v1521 = vrcp.pop %v1509
          %v1522 = vmul.f32 1.0, %v1521
          %v1523 = vrcp.pop %v1510
          %v1524 = vmul.f32 1.0, %v1523
          %v1525 = vrcp.pop %v1511
          %v1526 = vmul.f32 1.0, %v1525
          %v1527 = vrcp.pop %v1512
          %v1528 = vmul.f32 1.0, %v1527
          %v1529 = vmul.f32 %v1514, 1.0614054
          %v1530 = vmul.f32 %v1516, 1.0614054
          %v1531 = vmul.f32 %v1518, 1.0614054
          %v1532 = vmul.f32 %v1520, 1.0614054
          %v1533 = vmul.f32 %v1522, 1.0614054
          %v1534 = vmul.f32 %v1524, 1.0614054
          %v1535 = vmul.f32 %v1526, 1.0614054
          %v1536 = vmul.f32 %v1528, 1.0614054
          %v1537 = vadd.f32 %v1529, -1.4531521
          %v1538 = vadd.f32 %v1530, -1.4531521
          %v1539 = vadd.f32 %v1531, -1.4531521
          %v1540 = vadd.f32 %v1532, -1.4531521
          %v1541 = vadd.f32 %v1533, -1.4531521
          %v1542 = vadd.f32 %v1534, -1.4531521
          %v1543 = vadd.f32 %v1535, -1.4531521
          %v1544 = vadd.f32 %v1536, -1.4531521
          %v1545 = vmul.f32 %v1537, %v1514
          %v1546 = vmul.f32 %v1538, %v1516
          %v1547 = vmul.f32 %v1539, %v1518
          %v1548 = vmul.f32 %v1540, %v1520
          %v1549 = vmul.f32 %v1541, %v1522
          %v1550 = vmul.f32 %v1542, %v1524
          %v1551 = vmul.f32 %v1543, %v1526
          %v1552 = vmul.f32 %v1544, %v1528
          %v1553 = vadd.f32 %v1545, 1.4214138
          %v1554 = vadd.f32 %v1546, 1.4214138
          %v1555 = vadd.f32 %v1547, 1.4214138
          %v1556 = vadd.f32 %v1548, 1.4214138
          %v1557 = vadd.f32 %v1549, 1.4214138
          %v1558 = vadd.f32 %v1550, 1.4214138
          %v1559 = vadd.f32 %v1551, 1.4214138
          %v1560 = vadd.f32 %v1552, 1.4214138
          %v1561 = vmul.f32 %v1553, %v1514
          %v1562 = vmul.f32 %v1554, %v1516
          %v1563 = vmul.f32 %v1555, %v1518
          %v1564 = vmul.f32 %v1556, %v1520
          %v1565 = vmul.f32 %v1557, %v1522
          %v1566 = vmul.f32 %v1558, %v1524
          %v1567 = vmul.f32 %v1559, %v1526
          %v1568 = vmul.f32 %v1560, %v1528
          %v1569 = vadd.f32 %v1561, -0.28449672
          %v1570 = vadd.f32 %v1562, -0.28449672
          %v1571 = vadd.f32 %v1563, -0.28449672
          %v1572 = vadd.f32 %v1564, -0.28449672
          %v1573 = vadd.f32 %v1565, -0.28449672
          %v1574 = vadd.f32 %v1566, -0.28449672
          %v1575 = vadd.f32 %v1567, -0.28449672
          %v1576 = vadd.f32 %v1568, -0.28449672
          %v1577 = vmul.f32 %v1569, %v1514
          %v1578 = vmul.f32 %v1570, %v1516
          %v1579 = vmul.f32 %v1571, %v1518
          %v1580 = vmul.f32 %v1572, %v1520
          %v1581 = vmul.f32 %v1573, %v1522
          %v1582 = vmul.f32 %v1574, %v1524
          %v1583 = vmul.f32 %v1575, %v1526
          %v1584 = vmul.f32 %v1576, %v1528
          %v1585 = vadd.f32 %v1577, 0.2548296
          %v1586 = vadd.f32 %v1578, 0.2548296
          %v1587 = vadd.f32 %v1579, 0.2548296
          %v1588 = vadd.f32 %v1580, 0.2548296
          %v1589 = vadd.f32 %v1581, 0.2548296
          %v1590 = vadd.f32 %v1582, 0.2548296
          %v1591 = vadd.f32 %v1583, 0.2548296
          %v1592 = vadd.f32 %v1584, 0.2548296
          %v1593 = vmul.f32 %v1585, %v1514
          %v1594 = vmul.f32 %v1586, %v1516
          %v1595 = vmul.f32 %v1587, %v1518
          %v1596 = vmul.f32 %v1588, %v1520
          %v1597 = vmul.f32 %v1589, %v1522
          %v1598 = vmul.f32 %v1590, %v1524
          %v1599 = vmul.f32 %v1591, %v1526
          %v1600 = vmul.f32 %v1592, %v1528
          %v1601 = vsub.f32 0.0, %v1489
          %v1602 = vsub.f32 0.0, %v1490
          %v1603 = vsub.f32 0.0, %v1491
          %v1604 = vsub.f32 0.0, %v1492
          %v1605 = vsub.f32 0.0, %v1493
          %v1606 = vsub.f32 0.0, %v1494
          %v1607 = vsub.f32 0.0, %v1495
          %v1608 = vsub.f32 0.0, %v1496
          %v1609 = vmul.f32 %v1601, %v1489
          %v1610 = vmul.f32 %v1602, %v1490
          %v1611 = vmul.f32 %v1603, %v1491
          %v1612 = vmul.f32 %v1604, %v1492
          %v1613 = vmul.f32 %v1605, %v1493
          %v1614 = vmul.f32 %v1606, %v1494
          %v1615 = vmul.f32 %v1607, %v1495
          %v1616 = vmul.f32 %v1608, %v1496
          %v1617 = vmul.f32 %v1609, 1.442695
          %v1618 = vpow.pop %v1617
          %v1619 = vmul.f32 %v1610, 1.442695
          %v1620 = vpow.pop %v1619
          %v1621 = vmul.f32 %v1611, 1.442695
          %v1622 = vpow.pop %v1621
          %v1623 = vmul.f32 %v1612, 1.442695
          %v1624 = vpow.pop %v1623
          %v1625 = vmul.f32 %v1613, 1.442695
          %v1626 = vpow.pop %v1625
          %v1627 = vmul.f32 %v1614, 1.442695
          %v1628 = vpow.pop %v1627
          %v1629 = vmul.f32 %v1615, 1.442695
          %v1630 = vpow.pop %v1629
          %v1631 = vmul.f32 %v1616, 1.442695
          %v1632 = vpow.pop %v1631
          %v1633 = vmul.f32 %v1593, %v1618
          %v1634 = vmul.f32 %v1594, %v1620
          %v1635 = vmul.f32 %v1595, %v1622
          %v1636 = vmul.f32 %v1596, %v1624
          %v1637 = vmul.f32 %v1597, %v1626
          %v1638 = vmul.f32 %v1598, %v1628
          %v1639 = vmul.f32 %v1599, %v1630
          %v1640 = vmul.f32 %v1600, %v1632
          %v1641 = vsub.f32 1.0, %v1633
          %v1642 = vsub.f32 1.0, %v1634
          %v1643 = vsub.f32 1.0, %v1635
          %v1644 = vsub.f32 1.0, %v1636
          %v1645 = vsub.f32 1.0, %v1637
          %v1646 = vsub.f32 1.0, %v1638
          %v1647 = vsub.f32 1.0, %v1639
          %v1648 = vsub.f32 1.0, %v1640
          %vm1649 = vcmp.ge.f32.partialorder %v1481, 0.0
          %vm1650 = vcmp.ge.f32.partialorder %v1482, 0.0
          %vm1651 = vcmp.ge.f32.partialorder %v1483, 0.0
          %vm1652 = vcmp.ge.f32.partialorder %v1484, 0.0
          %vm1653 = vcmp.ge.f32.partialorder %v1485, 0.0
          %vm1654 = vcmp.ge.f32.partialorder %v1486, 0.0
          %vm1655 = vcmp.ge.f32.partialorder %v1487, 0.0
          %vm1656 = vcmp.ge.f32.partialorder %v1488, 0.0
          %v1657 = vsub.f32 0.0, %v1641
          %v1658 = vsub.f32 0.0, %v1642
          %v1659 = vsub.f32 0.0, %v1643
          %v1660 = vsub.f32 0.0, %v1644
          %v1661 = vsub.f32 0.0, %v1645
          %v1662 = vsub.f32 0.0, %v1646
          %v1663 = vsub.f32 0.0, %v1647
          %v1664 = vsub.f32 0.0, %v1648
          %v1665 = vsel %vm1649, %v1641, %v1657
          %v1666 = vsel %vm1650, %v1642, %v1658
          %v1667 = vsel %vm1651, %v1643, %v1659
          %v1668 = vsel %vm1652, %v1644, %v1660
          %v1669 = vsel %vm1653, %v1645, %v1661
          %v1670 = vsel %vm1654, %v1646, %v1662
          %v1671 = vsel %vm1655, %v1647, %v1663
          %v1672 = vsel %vm1656, %v1648, %v1664
          %v1673 = vadd.f32 %v1665, 1.0
          %v1674 = vadd.f32 %v1666, 1.0
          %v1675 = vadd.f32 %v1667, 1.0
          %v1676 = vadd.f32 %v1668, 1.0
          %v1677 = vadd.f32 %v1669, 1.0
          %v1678 = vadd.f32 %v1670, 1.0
          %v1679 = vadd.f32 %v1671, 1.0
          %v1680 = vadd.f32 %v1672, 1.0
          %v1681 = vmul.f32 %v1473, %v1673
          %v1682 = vmul.f32 %v1474, %v1674
          %v1683 = vmul.f32 %v1475, %v1675
          %v1684 = vmul.f32 %v1476, %v1676
          %v1685 = vmul.f32 %v1477, %v1677
          %v1686 = vmul.f32 %v1478, %v1678
          %v1687 = vmul.f32 %v1479, %v1679
          %v1688 = vmul.f32 %v1480, %v1680
          %v1689 = vld [vmem:[#allocation2] sm:$0xff]
          %v1690 = vld [vmem:[#allocation2 + $0x8] sm:$0xff]
          %v1691 = vld [vmem:[#allocation2 + $0x10] sm:$0xff]
          %v1692 = vld [vmem:[#allocation2 + $0x18] sm:$0xff]
          %v1693 = vld [vmem:[%s480] sm:$0xff]
          %v1694 = vld [vmem:[%s480 + $0x8] sm:$0xff]
          %v1695 = vld [vmem:[%s480 + $0x10] sm:$0xff]
          %v1696 = vld [vmem:[%s480 + $0x18] sm:$0xff]
          %v1697 = vld [vmem:[%s480 + $0x20] sm:$0xff]
          %v1698 = vld [vmem:[%s480 + $0x28] sm:$0xff]
          %v1699 = vld [vmem:[%s480 + $0x30] sm:$0xff]
          %v1700 = vld [vmem:[%s480 + $0x38] sm:$0xff]
          %v1701 = vld [vmem:[%s480 + $0x40] sm:$0xff]
          %v1702 = vld [vmem:[%s480 + $0x48] sm:$0xff]
          %v1703 = vld [vmem:[%s480 + $0x50] sm:$0xff]
          %v1704 = vld [vmem:[%s480 + $0x58] sm:$0xff]
          %v1705 = vld [vmem:[%s480 + $0x60] sm:$0xff]
          %v1706 = vld [vmem:[%s480 + $0x68] sm:$0xff]
          %v1707 = vld [vmem:[%s480 + $0x70] sm:$0xff]
          %v1708 = vld [vmem:[%s480 + $0x78] sm:$0xff]
          %v1709 = vld [vmem:[%s480 + $0x80] sm:$0xff]
          %v1710 = vld [vmem:[%s480 + $0x88] sm:$0xff]
          %v1711 = vld [vmem:[%s480 + $0x90] sm:$0xff]
          %v1712 = vld [vmem:[%s480 + $0x98] sm:$0xff]
          %v1713 = vld [vmem:[%s480 + $0xa0] sm:$0xff]
          %v1714 = vld [vmem:[%s480 + $0xa8] sm:$0xff]
          %v1715 = vld [vmem:[%s480 + $0xb0] sm:$0xff]
          %v1716 = vld [vmem:[%s480 + $0xb8] sm:$0xff]
          %v1717 = vld [vmem:[%s480 + $0xc0] sm:$0xff]
          %v1718 = vld [vmem:[%s480 + $0xc8] sm:$0xff]
          %v1719 = vld [vmem:[%s480 + $0xd0] sm:$0xff]
          %v1720 = vld [vmem:[%s480 + $0xd8] sm:$0xff]
          %v1721 = vld [vmem:[%s480 + $0xe0] sm:$0xff]
          %v1722 = vld [vmem:[%s480 + $0xe8] sm:$0xff]
          %v1723 = vld [vmem:[%s480 + $0xf0] sm:$0xff]
          %v1724 = vld [vmem:[%s480 + $0xf8] sm:$0xff]
          %v1725 = vld [vmem:[%s480 + $0x100] sm:$0xff]
          %v1726 = vld [vmem:[%s480 + $0x108] sm:$0xff]
          %v1727 = vld [vmem:[%s480 + $0x110] sm:$0xff]
          %v1728 = vld [vmem:[%s480 + $0x118] sm:$0xff]
          %v1729 = vld [vmem:[%s480 + $0x120] sm:$0xff]
          %v1730 = vld [vmem:[%s480 + $0x128] sm:$0xff]
          %v1731 = vld [vmem:[%s480 + $0x130] sm:$0xff]
          %v1732 = vld [vmem:[%s480 + $0x138] sm:$0xff]
          %v1733 = vld [vmem:[%s480 + $0x140] sm:$0xff]
          %v1734 = vld [vmem:[%s480 + $0x148] sm:$0xff]
          %v1735 = vld [vmem:[%s480 + $0x150] sm:$0xff]
          %v1736 = vld [vmem:[%s480 + $0x158] sm:$0xff]
          %v1737 = vld [vmem:[%s480 + $0x160] sm:$0xff]
          %v1738 = vld [vmem:[%s480 + $0x168] sm:$0xff]
          %v1739 = vld [vmem:[%s480 + $0x170] sm:$0xff]
          %v1740 = vld [vmem:[%s480 + $0x178] sm:$0xff]
          %v1741 = vld [vmem:[%s480 + $0x180] sm:$0xff]
          %v1742 = vld [vmem:[%s480 + $0x188] sm:$0xff]
          %v1743 = vld [vmem:[%s480 + $0x190] sm:$0xff]
          %v1744 = vld [vmem:[%s480 + $0x198] sm:$0xff]
          %v1745 = vld [vmem:[%s480 + $0x1a0] sm:$0xff]
          %v1746 = vld [vmem:[%s480 + $0x1a8] sm:$0xff]
          %v1747 = vld [vmem:[%s480 + $0x1b0] sm:$0xff]
          %v1748 = vld [vmem:[%s480 + $0x1b8] sm:$0xff]
          %v1749 = vld [vmem:[%s480 + $0x1c0] sm:$0xff]
          %v1750 = vld [vmem:[%s480 + $0x1c8] sm:$0xff]
          %v1751 = vld [vmem:[%s480 + $0x1d0] sm:$0xff]
          %v1752 = vld [vmem:[%s480 + $0x1d8] sm:$0xff]
          %v1753 = vld [vmem:[%s480 + $0x1e0] sm:$0xff]
          %v1754 = vld [vmem:[%s480 + $0x1e8] sm:$0xff]
          %v1755 = vld [vmem:[%s480 + $0x1f0] sm:$0xff]
          %v1756 = vld [vmem:[%s480 + $0x1f8] sm:$0xff]
          %v1757 = vld [vmem:[%s480 + $0x200] sm:$0xff]
          %v1758 = vld [vmem:[%s480 + $0x208] sm:$0xff]
          %v1759 = vld [vmem:[%s480 + $0x210] sm:$0xff]
          %v1760 = vld [vmem:[%s480 + $0x218] sm:$0xff]
          %v1761 = vld [vmem:[%s480 + $0x220] sm:$0xff]
          %v1762 = vld [vmem:[%s480 + $0x228] sm:$0xff]
          %v1763 = vld [vmem:[%s480 + $0x230] sm:$0xff]
          %v1764 = vld [vmem:[%s480 + $0x238] sm:$0xff]
          %v1765 = vld [vmem:[%s480 + $0x240] sm:$0xff]
          %v1766 = vld [vmem:[%s480 + $0x248] sm:$0xff]
          %v1767 = vld [vmem:[%s480 + $0x250] sm:$0xff]
          %v1768 = vld [vmem:[%s480 + $0x258] sm:$0xff]
          %v1769 = vld [vmem:[%s480 + $0x260] sm:$0xff]
          %v1770 = vld [vmem:[%s480 + $0x268] sm:$0xff]
          %v1771 = vld [vmem:[%s480 + $0x270] sm:$0xff]
          %v1772 = vld [vmem:[%s480 + $0x278] sm:$0xff]
          %v1773 = vld [vmem:[%s480 + $0x280] sm:$0xff]
          %v1774 = vld [vmem:[%s480 + $0x288] sm:$0xff]
          %v1775 = vld [vmem:[%s480 + $0x290] sm:$0xff]
          %v1776 = vld [vmem:[%s480 + $0x298] sm:$0xff]
          %v1777 = vld [vmem:[%s480 + $0x2a0] sm:$0xff]
          %v1778 = vld [vmem:[%s480 + $0x2a8] sm:$0xff]
          %v1779 = vld [vmem:[%s480 + $0x2b0] sm:$0xff]
          %v1780 = vld [vmem:[%s480 + $0x2b8] sm:$0xff]
          %v1781 = vld [vmem:[%s480 + $0x2c0] sm:$0xff]
          %v1782 = vld [vmem:[%s480 + $0x2c8] sm:$0xff]
          %v1783 = vld [vmem:[%s480 + $0x2d0] sm:$0xff]
          %v1784 = vld [vmem:[%s480 + $0x2d8] sm:$0xff]
          %v1785 = vld [vmem:[%s480 + $0x2e0] sm:$0xff]
          %v1786 = vld [vmem:[%s480 + $0x2e8] sm:$0xff]
          %v1787 = vld [vmem:[%s480 + $0x2f0] sm:$0xff]
          %v1788 = vld [vmem:[%s480 + $0x2f8] sm:$0xff]
          %v1789 = vld [vmem:[%s480 + $0x300] sm:$0xff]
          %v1790 = vld [vmem:[%s480 + $0x308] sm:$0xff]
          %v1791 = vld [vmem:[%s480 + $0x310] sm:$0xff]
          %v1792 = vld [vmem:[%s480 + $0x318] sm:$0xff]
          %v1793 = vld [vmem:[%s480 + $0x320] sm:$0xff]
          %v1794 = vld [vmem:[%s480 + $0x328] sm:$0xff]
          %v1795 = vld [vmem:[%s480 + $0x330] sm:$0xff]
          %v1796 = vld [vmem:[%s480 + $0x338] sm:$0xff]
          %v1797 = vld [vmem:[%s480 + $0x340] sm:$0xff]
          %v1798 = vld [vmem:[%s480 + $0x348] sm:$0xff]
          %v1799 = vld [vmem:[%s480 + $0x350] sm:$0xff]
          %v1800 = vld [vmem:[%s480 + $0x358] sm:$0xff]
          %v1801 = vld [vmem:[%s480 + $0x360] sm:$0xff]
          %v1802 = vld [vmem:[%s480 + $0x368] sm:$0xff]
          %v1803 = vld [vmem:[%s480 + $0x370] sm:$0xff]
          %v1804 = vld [vmem:[%s480 + $0x378] sm:$0xff]
          %v1805 = vld [vmem:[%s480 + $0x380] sm:$0xff]
          %v1806 = vld [vmem:[%s480 + $0x388] sm:$0xff]
          %v1807 = vld [vmem:[%s480 + $0x390] sm:$0xff]
          %v1808 = vld [vmem:[%s480 + $0x398] sm:$0xff]
          %v1809 = vld [vmem:[%s480 + $0x3a0] sm:$0xff]
          %v1810 = vld [vmem:[%s480 + $0x3a8] sm:$0xff]
          %v1811 = vld [vmem:[%s480 + $0x3b0] sm:$0xff]
          %v1812 = vld [vmem:[%s480 + $0x3b8] sm:$0xff]
          %v1813 = vld [vmem:[%s480 + $0x3c0] sm:$0xff]
          %v1814 = vld [vmem:[%s480 + $0x3c8] sm:$0xff]
          %v1815 = vld [vmem:[%s480 + $0x3d0] sm:$0xff]
          %v1816 = vld [vmem:[%s480 + $0x3d8] sm:$0xff]
          %v1817 = vld [vmem:[%s480 + $0x3e0] sm:$0xff]
          %v1818 = vld [vmem:[%s480 + $0x3e8] sm:$0xff]
          %v1819 = vld [vmem:[%s480 + $0x3f0] sm:$0xff]
          %v1820 = vld [vmem:[%s480 + $0x3f8] sm:$0xff]
          %1821 = vmatprep.subr.mxu0 %v1694
          %1822 = vmatpush1.msra.mxu0 %v1693
          %1823 = vmatprep.subr.mxu0 %v1696
          %1824 = vmatpush1.msra.mxu0 %v1695
          %1825 = vmatprep.subr.mxu0 %v1698
          %1826 = vmatpush1.msra.mxu0 %v1697
          %1827 = vmatprep.subr.mxu0 %v1700
          %1828 = vmatpush1.msra.mxu0 %v1699
          %1829 = vmatprep.subr.mxu0 %v1702
          %1830 = vmatpush1.msra.mxu0 %v1701
          %1831 = vmatprep.subr.mxu0 %v1704
          %1832 = vmatpush1.msra.mxu0 %v1703
          %1833 = vmatprep.subr.mxu0 %v1706
          %1834 = vmatpush1.msra.mxu0 %v1705
          %1835 = vmatprep.subr.mxu0 %v1708
          %1836 = vmatpush1.msra.mxu0 %v1707
          %1837 = vmatprep.subr.mxu0 %v1710
          %1838 = vmatpush1.msra.mxu0 %v1709
          %1839 = vmatprep.subr.mxu0 %v1712
          %1840 = vmatpush1.msra.mxu0 %v1711
          %1841 = vmatprep.subr.mxu0 %v1714
          %1842 = vmatpush1.msra.mxu0 %v1713
          %1843 = vmatprep.subr.mxu0 %v1716
          %1844 = vmatpush1.msra.mxu0 %v1715
          %1845 = vmatprep.subr.mxu0 %v1718
          %1846 = vmatpush1.msra.mxu0 %v1717
          %1847 = vmatprep.subr.mxu0 %v1720
          %1848 = vmatpush1.msra.mxu0 %v1719
          %1849 = vmatprep.subr.mxu0 %v1722
          %1850 = vmatpush1.msra.mxu0 %v1721
          %1851 = vmatprep.subr.mxu0 %v1724
          %1852 = vmatpush1.msra.mxu0 %v1723
          %1853 = vmatprep.subr.mxu0 %v1726
          %1854 = vmatpush1.msra.mxu0 %v1725
          %1855 = vmatprep.subr.mxu0 %v1728
          %1856 = vmatpush1.msra.mxu0 %v1727
          %1857 = vmatprep.subr.mxu0 %v1730
          %1858 = vmatpush1.msra.mxu0 %v1729
          %1859 = vmatprep.subr.mxu0 %v1732
          %1860 = vmatpush1.msra.mxu0 %v1731
          %1861 = vmatprep.subr.mxu0 %v1734
          %1862 = vmatpush1.msra.mxu0 %v1733
          %1863 = vmatprep.subr.mxu0 %v1736
          %1864 = vmatpush1.msra.mxu0 %v1735
          %1865 = vmatprep.subr.mxu0 %v1738
          %1866 = vmatpush1.msra.mxu0 %v1737
          %1867 = vmatprep.subr.mxu0 %v1740
          %1868 = vmatpush1.msra.mxu0 %v1739
          %1869 = vmatprep.subr.mxu0 %v1742
          %1870 = vmatpush1.msra.mxu0 %v1741
          %1871 = vmatprep.subr.mxu0 %v1744
          %1872 = vmatpush1.msra.mxu0 %v1743
          %1873 = vmatprep.subr.mxu0 %v1746
          %1874 = vmatpush1.msra.mxu0 %v1745
          %1875 = vmatprep.subr.mxu0 %v1748
          %1876 = vmatpush1.msra.mxu0 %v1747
          %1877 = vmatprep.subr.mxu0 %v1750
          %1878 = vmatpush1.msra.mxu0 %v1749
          %1879 = vmatprep.subr.mxu0 %v1752
          %1880 = vmatpush1.msra.mxu0 %v1751
          %1881 = vmatprep.subr.mxu0 %v1754
          %1882 = vmatpush1.msra.mxu0 %v1753
          %1883 = vmatprep.subr.mxu0 %v1756
          %1884 = vmatpush1.msra.mxu0 %v1755
          %1885 = vmatprep.mubr.f32.mxu0 %v1682
          %1886 = vmatmul.mubr.f32.gmra.mrb[0].mxu0 %v1681
          %v1887 = vpop.f32.mrb[0].mxu0
          %v1888 = vadd.f32 0.0, %v1887
          %v1889 = vpop.f32.mrb[0].mxu0
          %v1890 = vadd.f32 0.0, %v1889
          %1891 = vmatprep.mubr.f32.mxu0 %v1686
          %1892 = vmatmul.mubr.f32.gmra.mrb[0].mxu0 %v1685
          %v1893 = vpop.f32.mrb[0].mxu0
          %v1894 = vadd.f32 0.0, %v1893
          %v1895 = vpop.f32.mrb[0].mxu0
          %v1896 = vadd.f32 0.0, %v1895
          %1897 = vdwg.mxu0
          %1898 = vmatprep.subr.mxu0 %v1758
          %1899 = vmatpush1.msra.mxu0 %v1757
          %1900 = vmatprep.subr.mxu0 %v1760
          %1901 = vmatpush1.msra.mxu0 %v1759
          %1902 = vmatprep.subr.mxu0 %v1762
          %1903 = vmatpush1.msra.mxu0 %v1761
          %1904 = vmatprep.subr.mxu0 %v1764
          %1905 = vmatpush1.msra.mxu0 %v1763
          %1906 = vmatprep.subr.mxu0 %v1766
          %1907 = vmatpush1.msra.mxu0 %v1765
          %1908 = vmatprep.subr.mxu0 %v1768
          %1909 = vmatpush1.msra.mxu0 %v1767
          %1910 = vmatprep.subr.mxu0 %v1770
          %1911 = vmatpush1.msra.mxu0 %v1769
          %1912 = vmatprep.subr.mxu0 %v1772
          %1913 = vmatpush1.msra.mxu0 %v1771
          %1914 = vmatprep.subr.mxu0 %v1774
          %1915 = vmatpush1.msra.mxu0 %v1773
          %1916 = vmatprep.subr.mxu0 %v1776
          %1917 = vmatpush1.msra.mxu0 %v1775
          %1918 = vmatprep.subr.mxu0 %v1778
          %1919 = vmatpush1.msra.mxu0 %v1777
          %1920 = vmatprep.subr.mxu0 %v1780
          %1921 = vmatpush1.msra.mxu0 %v1779
          %1922 = vmatprep.subr.mxu0 %v1782
          %1923 = vmatpush1.msra.mxu0 %v1781
          %1924 = vmatprep.subr.mxu0 %v1784
          %1925 = vmatpush1.msra.mxu0 %v1783
          %1926 = vmatprep.subr.mxu0 %v1786
          %1927 = vmatpush1.msra.mxu0 %v1785
          %1928 = vmatprep.subr.mxu0 %v1788
          %1929 = vmatpush1.msra.mxu0 %v1787
          %1930 = vmatprep.subr.mxu0 %v1790
          %1931 = vmatpush1.msra.mxu0 %v1789
          %1932 = vmatprep.subr.mxu0 %v1792
          %1933 = vmatpush1.msra.mxu0 %v1791
          %1934 = vmatprep.subr.mxu0 %v1794
          %1935 = vmatpush1.msra.mxu0 %v1793
          %1936 = vmatprep.subr.mxu0 %v1796
          %1937 = vmatpush1.msra.mxu0 %v1795
          %1938 = vmatprep.subr.mxu0 %v1798
          %1939 = vmatpush1.msra.mxu0 %v1797
          %1940 = vmatprep.subr.mxu0 %v1800
          %1941 = vmatpush1.msra.mxu0 %v1799
          %1942 = vmatprep.subr.mxu0 %v1802
          %1943 = vmatpush1.msra.mxu0 %v1801
          %1944 = vmatprep.subr.mxu0 %v1804
          %1945 = vmatpush1.msra.mxu0 %v1803
          %1946 = vmatprep.subr.mxu0 %v1806
          %1947 = vmatpush1.msra.mxu0 %v1805
          %1948 = vmatprep.subr.mxu0 %v1808
          %1949 = vmatpush1.msra.mxu0 %v1807
          %1950 = vmatprep.subr.mxu0 %v1810
          %1951 = vmatpush1.msra.mxu0 %v1809
          %1952 = vmatprep.subr.mxu0 %v1812
          %1953 = vmatpush1.msra.mxu0 %v1811
          %1954 = vmatprep.subr.mxu0 %v1814
          %1955 = vmatpush1.msra.mxu0 %v1813
          %1956 = vmatprep.subr.mxu0 %v1816
          %1957 = vmatpush1.msra.mxu0 %v1815
          %1958 = vmatprep.subr.mxu0 %v1818
          %1959 = vmatpush1.msra.mxu0 %v1817
          %1960 = vmatprep.subr.mxu0 %v1820
          %1961 = vmatpush1.msra.mxu0 %v1819
          %1962 = vmatprep.mubr.f32.mxu0 %v1684
          %1963 = vmatmul.mubr.f32.gmra.mrb[0].mxu0 %v1683
          %v1964 = vpop.f32.mrb[0].mxu0
          %v1965 = vadd.f32 %v1888, %v1964
          %v1966 = vpop.f32.mrb[0].mxu0
          %v1967 = vadd.f32 %v1890, %v1966
          %1968 = vmatprep.mubr.f32.mxu0 %v1688
          %1969 = vmatmul.mubr.f32.gmra.mrb[0].mxu0 %v1687
          %v1970 = vpop.f32.mrb[0].mxu0
          %v1971 = vadd.f32 %v1894, %v1970
          %v1972 = vpop.f32.mrb[0].mxu0
          %v1973 = vadd.f32 %v1896, %v1972
          %1974 = vdwg.mxu0
          %v1975 = vadd.f32 %v1689, %v1965
          %v1976 = vadd.f32 %v1690, %v1967
          %v1977 = vadd.f32 %v1691, %v1971
          %v1978 = vadd.f32 %v1692, %v1973
          %1979 = vst [vmem:[#allocation2] sm:$0xff] %v1975
          %1980 = vst [vmem:[#allocation2 + $0x8] sm:$0xff] %v1976
          %1981 = vst [vmem:[#allocation2 + $0x10] sm:$0xff] %v1977
          %1982 = vst [vmem:[#allocation2 + $0x18] sm:$0xff] %v1978
        $region80: #{tpu_custom_call.1} parent=51 // pred_fallthru
          _
        %p1983 = scmp.eq.s32.totalorder %s36, 1
        // Predicated region
        $region81: #{tpu_custom_call.1} parent=51 // pred_check
          %p1984 = pneg %p1983
        $region82: #{tpu_custom_call.1} parent=51 // pred_check_branch
          %1986 = sbr.rel (%p1984) target = $region84
        $region83: #{tpu_custom_call.1} parent=51 // pred_region
          %v1987 = vld [vmem:[#allocation2] sm:$0xff]
          %v1988 = vld [vmem:[#allocation2 + $0x8] sm:$0xff]
          %v1989 = vld [vmem:[#allocation2 + $0x10] sm:$0xff]
          %v1990 = vld [vmem:[#allocation2 + $0x18] sm:$0xff]
          %v1991 = vld [vmem:[%s3] sm:$0x3]
          %v1993 = vlaneseq
          %v1994 = vshrl.u32 %v1993, 7
          %v1995 = vsub.s32 0, %v1994
          %v1996 = vrot.slane %v1991, %v1995
          %v1997 = vlaneseq
          %v1998 = vshrl.u32 %v1997, 7
          %v1999 = vsub.s32 1, %v1998
          %v2000 = vrot.slane %v1991, %v1999
          %v2003 = vadd.f32 %v1987, %v1996
          %v2004 = vadd.f32 %v1988, %v2000
          %v2005 = vadd.f32 %v1989, %v1996
          %v2006 = vadd.f32 %v1990, %v2000
          %v2007 = vld [vmem:[%s7] sm:$0x3]
          %v2009 = vlaneseq
          %v2010 = vshrl.u32 %v2009, 7
          %v2011 = vsub.s32 0, %v2010
          %v2012 = vrot.slane %v2007, %v2011
          %v2013 = vlaneseq
          %v2014 = vshrl.u32 %v2013, 7
          %v2015 = vsub.s32 1, %v2014
          %v2016 = vrot.slane %v2007, %v2015
          %v2019 = vadd.f32 %v2003, %v2012
          %v2020 = vadd.f32 %v2004, %v2016
          %v2021 = vadd.f32 %v2005, %v2012
          %v2022 = vadd.f32 %v2006, %v2016
          %v2023 = vadd.f32 %v2019, %v2020
          %2024 = vadd.xlane.f32.xlu0 %v2023
          %v2025 = vpop.xlane.xlu0 %2024
          %v2026 = vadd.f32 %v2021, %v2022
          %2027 = vadd.xlane.f32.xlu0 %v2026
          %v2028 = vpop.xlane.xlu0 %2027
          %v2029 = vrcp.pop 256.0
          %v2030 = vmul.f32 %v2025, %v2029
          %v2031 = vmul.f32 %v2028, %v2029
          %v2032 = vsub.f32 %v2019, %v2030
          %v2033 = vsub.f32 %v2020, %v2030
          %v2034 = vsub.f32 %v2021, %v2031
          %v2035 = vsub.f32 %v2022, %v2031
          %v2036 = vmul.f32 %v2032, %v2032
          %v2037 = vmul.f32 %v2033, %v2033
          %v2038 = vmul.f32 %v2034, %v2034
          %v2039 = vmul.f32 %v2035, %v2035
          %v2040 = vadd.f32 %v2036, %v2037
          %2041 = vadd.xlane.f32.xlu0 %v2040
          %v2042 = vpop.xlane.xlu0 %2041
          %v2043 = vadd.f32 %v2038, %v2039
          %2044 = vadd.xlane.f32.xlu0 %v2043
          %v2045 = vpop.xlane.xlu0 %2044
          %v2046 = vmul.f32 %v2042, %v2029
          %v2047 = vmul.f32 %v2045, %v2029
          %v2048 = vadd.f32 %v2046, 1e-05
          %v2049 = vadd.f32 %v2047, 1e-05
          %v2050 = vrsqrt.pop %v2048
          %v2051 = vrsqrt.pop %v2049
          %v2052 = vmul.f32 %v2032, %v2050
          %v2053 = vmul.f32 %v2033, %v2050
          %v2054 = vmul.f32 %v2034, %v2051
          %v2055 = vmul.f32 %v2035, %v2051
          %2056 = vst [vmem:[%s538] sm:$0xff] %v2052
          %2057 = vst [vmem:[%s538 + $0x8] sm:$0xff] %v2053
          %2058 = vst [vmem:[%s538 + $0x10] sm:$0xff] %v2054
          %2059 = vst [vmem:[%s538 + $0x18] sm:$0xff] %v2055
        $region84: #{tpu_custom_call.1} parent=51 // pred_fallthru
          _
        %s2060 = sand.u32 %s269, 1
        %s2061 = scalar_lea.sflag [#allocation5], %s2060
        %s2062 = sand.u32 %s269, 1
        %s2063 = smul.addr %s2062, 32
        %s2064 = scalar_lea.vmem [#allocation12], %s2063
        // Predicated region
        $region85: #{tpu_custom_call.1} parent=51 // pred_check
          %p2065 = pneg %p279
        $region86: #{tpu_custom_call.1} parent=51 // pred_check_branch
          %2067 = sbr.rel (%p2065) target = $region88
        $region87: #{tpu_custom_call.1} parent=51 // pred_region
          %s2069 = ssub.s32 512, 512
          %2070 = vsyncadd %s2061, %s2069
          %s2071 = smul.addr %s35, 4
          %s2072 = smul.addr %s2071, 128
          %s2073 = scalar_lea.hbm %s8, %s2072
          %s2074 = sshll.u32 %s2064, 4
          %s2075 = int_to_ptr.vmem [resolvable:$true] %s2074
          %2080 = dma.vmem_to_hbm [thread:$0]  %s2075, 512, %s2073, %s2061, 256, 256, 16
        $region88: #{tpu_custom_call.1} parent=51 // pred_fallthru
          _
      $region52: #{tpu_custom_call.1} parent=5 // pred_fallthru
        _
      %p2081 = scmp.le.s32.totalorder 2, %s26
      // Predicated region
      $region89: #{tpu_custom_call.1} parent=5 // pred_check
        %p2082 = pneg %p2081
      $region90: #{tpu_custom_call.1} parent=5 // pred_check_branch
        %2084 = sbr.rel (%p2082) target = $region92
      $region91: #{tpu_custom_call.1} parent=5 // pred_region
        %s2085 = ssub.s32 %s26, 2
        // Predicated region
        $region93: #{tpu_custom_call.1} parent=91 // pred_check
          %p2086 = pneg %p285
        $region94: #{tpu_custom_call.1} parent=91 // pred_check_branch
          %2088 = sbr.rel (%p2086) target = $region96
        $region95: #{tpu_custom_call.1} parent=91 // pred_region
          %s2089 = sand.u32 %s270, 1
          %s2090 = scalar_lea.sflag [#allocation5], %s2089
          %s2091 = sand.u32 %s270, 1
          %s2092 = smul.addr %s2091, 32
          %s2093 = scalar_lea.vmem [#allocation12], %s2092
          %2094 = dma.done %s2090, 512
        $region96: #{tpu_custom_call.1} parent=91 // pred_fallthru
          _
      $region92: #{tpu_custom_call.1} parent=5 // pred_fallthru
        _
    $region6: #{tpu_custom_call.1} parent=1 // loop_footer
      %s30 = sadd.s32 1, %s26
    $region7: #{tpu_custom_call.1} parent=1 // loop_footer_branch
      %25 = sbr.rel target = $region3
    $region8: #{tpu_custom_call.1} parent=1 // loop_exit
      _
    %2095 = vsyncpa [#allocation4], 1
    %s2096 = scalar_lea.sflag [#allocation4], 1
    %2097 = vsyncpa %s2096, 1
    %2098 = vsyncpa [#allocation7], 1
    %s2099 = scalar_lea.sflag [#allocation7], 1
    %2100 = vsyncpa %s2099, 1
    %2101 = vsyncpa [#allocation10], 1
    %s2102 = scalar_lea.sflag [#allocation10], 1
    %2103 = vsyncpa %s2102, 1
    %2104 = vsyncpa [#allocation5], 1
    %s2105 = scalar_lea.sflag [#allocation5], 1
    %2106 = vsyncpa %s2105, 1

</llo_original>
